<compile_context>
chip_gen: v7x
topology: tpu7x:2x2x1
jax: 0.10.0
libtpu: 0.0.40
codegen_flags: <defaults>
</compile_context>

<pallas_src>
import jax
import jax.numpy as jnp
from jax.experimental import pallas as pl
from jax.experimental.pallas import tpu as pltpu


def _round_up(x, m):
    return ((x + m - 1) // m) * m


def _make_gru_fc_kernel(T_total, Tc, needs_mask, unroll):
    """Builds the gridded GRU-recurrence + FC kernel.

    Refs (per grid step):
      gi_ref : (Tc, Bt, 3H)  input projection chunk (b_ih and b_hr/b_hz pre-folded)
      whh_ref: (H, 3H)       hidden-to-hidden weights (no bias)
      bhn_ref: (1, H)        b_hn (must stay inside r * (W_hn h + b_hn))
      wfc_ref: (H, Lp)       final Linear weights (labels padded to 128 lanes)
      bfc_ref: (1, Lp)
      out_ref: (Bt, Lp)
      h_ref  : (Bt, H)       VMEM scratch carrying the hidden state across chunks
    """

    def kernel(gi_ref, whh_ref, bhn_ref, wfc_ref, bfc_ref, out_ref, h_ref):
        t_chunk = pl.program_id(1)
        H = whh_ref.shape[0]
        Bt = gi_ref.shape[1]

        @pl.when(t_chunk == 0)
        def _():
            h_ref[...] = jnp.zeros_like(h_ref)

        # Hoisted out of the time loop: one broadcast per chunk, not per step.
        b_hn = jnp.broadcast_to(bhn_ref[...], (Bt, H))
        base = t_chunk * Tc

        def step(t, h):
            gi = gi_ref[t]                                           # (Bt, 3H)
            # Reload W_hh column tiles right before each MXU push (no 48-vreg
            # value live across the loop).  Splitting rz / n lets the r/z
            # sigmoids (EUP) overlap the n-tile matmul drain.
            gh_rz = jnp.dot(h, whh_ref[:, 0:2 * H],
                            preferred_element_type=jnp.float32)      # (Bt, 2H)
            gh_n = jnp.dot(h, whh_ref[:, 2 * H:3 * H],
                           preferred_element_type=jnp.float32)       # (Bt, H)

            # PyTorch GRU cell (gate order r, z, n); b_ih/b_hr/b_hz are already
            # folded into gi, b_hn is added here inside the r * (.) term.
            r = jax.nn.sigmoid(gi[:, 0:H] + gh_rz[:, 0:H])
            z = jax.nn.sigmoid(gi[:, H:2 * H] + gh_rz[:, H:2 * H])
            n = jnp.tanh(gi[:, 2 * H:3 * H] + r * (gh_n + b_hn))
            h_new = n + z * (h - n)        # == (1-z)*n + z*h, one fewer VPU mul
            if needs_mask:
                # Last (padded) chunk only: freeze h past the true sequence end.
                h_new = jnp.where(base + t < T_total, h_new, h)
            return h_new

        h = jax.lax.fori_loop(0, Tc, step, h_ref[...], unroll=unroll)
        h_ref[...] = h

        @pl.when(t_chunk == pl.num_programs(1) - 1)
        def _():
            out_ref[...] = (jnp.dot(h, wfc_ref[...],
                                    preferred_element_type=jnp.float32)
                            + bfc_ref[...])

    return kernel


def text_model_forward(tokens, params):
    """tokens: (B, T) int32; returns logits (B, num_labels)."""
    emb = params["embedding"]          # (V, E)
    w_ih = params["w_ih"]              # (E, 3H)
    w_hh = params["w_hh"]              # (H, 3H)
    b_ih = params["b_ih"]              # (1, 3H)
    b_hh = params["b_hh"]              # (1, 3H)
    w_fc = params["w_fc"]              # (H, L)
    b_fc = params["b_fc"]              # (1, L)

    B, T = tokens.shape
    H = w_hh.shape[0]
    GH = 3 * H
    L = w_fc.shape[1]

    if T == 0:
        # Empty sequence: hidden stays zero -> logits are just the FC bias.
        return jnp.broadcast_to(b_fc, (B, L))

    # ---- static tiling decisions -----------------------------------------
    B_pad = max(8, _round_up(B, 8))            # f32 sublane count
    Bt = B_pad if B_pad <= 256 else 256        # batch tile (parallel axis on v7x)
    B_pad = _round_up(B_pad, Bt)
    NB = B_pad // Bt

    L_pad = max(128, _round_up(L, 128))        # lane-dense FC store

    # Time chunk: keep the double-buffered GI block well under the scoped VMEM
    # budget (<= ~4 MiB per buffer) and cap the in-kernel loop length.
    step_bytes = Bt * GH * 4
    Tc = max(1, min(T, 256, (4 << 20) // step_bytes))
    T_pad = _round_up(T, Tc)
    NT = T_pad // Tc
    unroll = max(1, min(8, Tc))

    # ---- hoisted, non-serial work (plain JAX; off the serial critical path) ----
    # Padded batch rows (token id 0) flow through harmlessly and are sliced off.
    tokens_p = jnp.pad(tokens, ((0, B_pad - B), (0, 0)))
    x_tm = emb[tokens_p.T]                                  # (T, B_pad, E) time-major
    x2d = x_tm.reshape(T * B_pad, -1)                       # one GEMM, M = T*B_pad
    # Fold b_ih fully and the r/z thirds of b_hh into GI; b_hn stays in-loop.
    bias_fold = jnp.concatenate(
        [b_ih[:, :2 * H] + b_hh[:, :2 * H], b_ih[:, 2 * H:]], axis=1)   # (1, 3H)
    gi = (jnp.dot(x2d, w_ih, preferred_element_type=jnp.float32)
          .reshape(T, B_pad, GH) + bias_fold)               # (T, B_pad, 3H)
    gi = jnp.pad(gi, ((0, T_pad - T), (0, 0), (0, 0)))      # padded steps are masked

    b_hn = b_hh[:, 2 * H:]                                  # (1, H)
    w_fc_p = jnp.pad(w_fc, ((0, 0), (0, L_pad - L)))
    b_fc_p = jnp.pad(b_fc, ((0, 0), (0, L_pad - L)))

    kernel = _make_gru_fc_kernel(T_total=T, Tc=Tc,
                                 needs_mask=(T_pad != T), unroll=unroll)

    # Per-grid-step VMEM: double-buffered GI chunk + resident weights/out/scratch,
    # clamped to the v7x physical budget (64 MiB).
    block_floats = (2 * Tc * Bt * GH + H * GH + H + H * L_pad + L_pad
                    + Bt * L_pad + Bt * H)
    vmem_limit = int(min(64 << 20, max(4 << 20, 8 * block_floats + (2 << 20))))

    out = pl.pallas_call(
        kernel,
        out_shape=jax.ShapeDtypeStruct((B_pad, L_pad), jnp.float32),
        grid=(NB, NT),
        in_specs=[
            pl.BlockSpec((Tc, Bt, GH), lambda b, t: (t, b, 0)),   # GI time chunks
            pl.BlockSpec((H, GH), lambda b, t: (0, 0)),           # W_hh
            pl.BlockSpec((1, H), lambda b, t: (0, 0)),            # b_hn
            pl.BlockSpec((H, L_pad), lambda b, t: (0, 0)),        # W_fc
            pl.BlockSpec((1, L_pad), lambda b, t: (0, 0)),        # b_fc
        ],
        out_specs=pl.BlockSpec((Bt, L_pad), lambda b, t: (b, 0)),
        scratch_shapes=[pltpu.VMEM((Bt, H), jnp.float32)],        # carried hidden
        compiler_params=pltpu.CompilerParams(
            dimension_semantics=("parallel", "arbitrary"),
            vmem_limit_bytes=vmem_limit),
    )(gi, w_hh, b_hn, w_fc_p, b_fc_p)

    return out[:B, :L]


def init_params(key, vocab_size, embed_dim, hidden, num_labels):
    ks = jax.random.split(key, 7)
    scale = 0.1
    return {
        "embedding": scale * jax.random.normal(ks[0], (vocab_size, embed_dim), jnp.float32),
        "w_ih": scale * jax.random.normal(ks[1], (embed_dim, 3 * hidden), jnp.float32),
        "w_hh": scale * jax.random.normal(ks[2], (hidden, 3 * hidden), jnp.float32),
        "b_ih": scale * jax.random.normal(ks[3], (1, 3 * hidden), jnp.float32),
        "b_hh": scale * jax.random.normal(ks[4], (1, 3 * hidden), jnp.float32),
        "w_fc": scale * jax.random.normal(ks[5], (hidden, num_labels), jnp.float32),
        "b_fc": scale * jax.random.normal(ks[6], (1, num_labels), jnp.float32),
    }


def reference_forward(tokens, params):
    """Pure-JAX reference with PyTorch GRU semantics (sanity check)."""
    x = params["embedding"][tokens]                 # (B, T, E)
    B, T, _ = x.shape
    H = params["w_hh"].shape[0]
    h = jnp.zeros((B, H), jnp.float32)
    for t in range(T):
        xt = x[:, t, :]
        gi = xt @ params["w_ih"] + params["b_ih"]
        gh = h @ params["w_hh"] + params["b_hh"]
        i_r, i_z, i_n = gi[:, :H], gi[:, H:2 * H], gi[:, 2 * H:]
        h_r, h_z, h_n = gh[:, :H], gh[:, H:2 * H], gh[:, 2 * H:]
        r = jax.nn.sigmoid(i_r + h_r)
        z = jax.nn.sigmoid(i_z + h_z)
        n = jnp.tanh(i_n + r * h_n)
        h = (1.0 - z) * n + z * h
    return h @ params["w_fc"] + params["b_fc"]


if __name__ == "__main__":
    VOCAB = 50
    EMBED = 32
    HIDDEN = 128        # fixed by the PyTorch module (nn.GRU(..., 128))
    NUM_LABELS = 5
    B, T = 4, 8

    key = jax.random.PRNGKey(0)
    pkey, tkey = jax.random.split(key)
    params = init_params(pkey, VOCAB, EMBED, HIDDEN, NUM_LABELS)
    tokens = jax.random.randint(tkey, (B, T), 0, VOCAB, dtype=jnp.int32)

    out = text_model_forward(tokens, params)
    out = jax.block_until_ready(out)

    ref = reference_forward(tokens, params)
    assert out.shape == (B, NUM_LABELS)
    assert jnp.allclose(out, ref, atol=1e-4, rtol=1e-4), "mismatch vs reference"

    print("KERNEL_OK")
</pallas_src>

<mosaic_0001>
module attributes {stable_mosaic.version = 11 : i64} {
  func.func @kernel(%arg0: i32, %arg1: i32, %arg2: memref<8x8x384xf32, #tpu.memory_space<vmem>>, %arg3: memref<128x384xf32, #tpu.memory_space<vmem>>, %arg4: memref<1x128xf32, #tpu.memory_space<vmem>>, %arg5: memref<128x128xf32, #tpu.memory_space<vmem>>, %arg6: memref<1x128xf32, #tpu.memory_space<vmem>>, %arg7: memref<8x128xf32, #tpu.memory_space<vmem>>, %arg8: memref<8x128xf32, #tpu.memory_space<vmem>>) attributes {dimension_semantics = [#tpu.dimension_semantics<parallel>, #tpu.dimension_semantics<arbitrary>], iteration_bounds = array<i64: 1, 1>, scalar_prefetch = 0 : i64, scratch_operands = 1 : i64, tpu.core_type = #tpu.core_type<tc>, window_params = [{transform_indices = @transform_0, window_bounds = array<i64: 8, 8, 384>}, {pipeline_mode = #tpu.pipeline_mode<synchronous>, transform_indices = @transform_1, window_bounds = array<i64: 128, 384>}, {pipeline_mode = #tpu.pipeline_mode<synchronous>, transform_indices = @transform_2, window_bounds = array<i64: 1, 128>}, {pipeline_mode = #tpu.pipeline_mode<synchronous>, transform_indices = @transform_3, window_bounds = array<i64: 128, 128>}, {pipeline_mode = #tpu.pipeline_mode<synchronous>, transform_indices = @transform_4, window_bounds = array<i64: 1, 128>}, {transform_indices = @transform_5, window_bounds = array<i64: 8, 128>}]} {
    %c0_i32 = arith.constant 0 : i32
    %0 = arith.cmpi eq, %arg1, %c0_i32 : i32
    %1 = arith.extui %0 : i1 to i32
    %c0_i32_0 = arith.constant 0 : i32
    %2 = arith.cmpi ne, %1, %c0_i32_0 : i32
    scf.if %2 {
      %cst_87 = arith.constant 0.000000e+00 : f32
      %259 = vector.broadcast %cst_87 : f32 to vector<8x128xf32>
      %c0_88 = arith.constant 0 : index
      %c0_89 = arith.constant 0 : index
      %260 = vector.load %arg8[%c0_88, %c0_89] : memref<8x128xf32, #tpu.memory_space<vmem>>, vector<8x128xf32>
      tpu.vector_store %arg8[%c0_88, %c0_89], %259 {strides = array<i32>} : memref<8x128xf32, #tpu.memory_space<vmem>>, vector<8x128xf32>,
    } else {
    }
    %c0 = arith.constant 0 : index
    %c0_1 = arith.constant 0 : index
    %3 = vector.load %arg4[%c0, %c0_1] : memref<1x128xf32, #tpu.memory_space<vmem>>, vector<1x128xf32>
    %4 = vector.shape_cast %3 : vector<1x128xf32> to vector<1x128xf32>
    %5 = vector.broadcast %4 : vector<1x128xf32> to vector<8x128xf32>
    %c0_2 = arith.constant 0 : index
    %c0_3 = arith.constant 0 : index
    %6 = vector.load %arg8[%c0_2, %c0_3] : memref<8x128xf32, #tpu.memory_space<vmem>>, vector<8x128xf32>
    %c0_i32_4 = arith.constant 0 : i32
    %7 = arith.index_cast %c0_i32_4 : i32 to index
    %c0_5 = arith.constant 0 : index
    %c0_6 = arith.constant 0 : index
    %8 = vector.load %arg2[%7, %c0_5, %c0_6] : memref<8x8x384xf32, #tpu.memory_space<vmem>>, vector<1x8x384xf32>
    %9 = vector.shape_cast %8 : vector<1x8x384xf32> to vector<8x384xf32>
    %c0_7 = arith.constant 0 : index
    %c0_8 = arith.constant 0 : index
    %10 = vector.load %arg3[%c0_7, %c0_8] : memref<128x384xf32, #tpu.memory_space<vmem>>, vector<128x256xf32>
    %cst = arith.constant dense<0.000000e+00> : vector<8x256xf32>
    %11 = tpu.matmul %6, %10, %cst {dimension_numbers = #tpu.dot_dimension_numbers<[1], [0], [0], [1], [0, 0, 1, 1], [], []>} : vector<8x128xf32>, vector<128x256xf32>, vector<8x256xf32> -> vector<8x256xf32>
    %c0_9 = arith.constant 0 : index
    %c256 = arith.constant 256 : index
    %12 = vector.load %arg3[%c0_9, %c256] : memref<128x384xf32, #tpu.memory_space<vmem>>, vector<128x128xf32>
    %cst_10 = arith.constant dense<0.000000e+00> : vector<8x128xf32>
    %13 = tpu.matmul %6, %12, %cst_10 {dimension_numbers = #tpu.dot_dimension_numbers<[1], [0], [0], [1], [0, 0, 1, 1], [], []>} : vector<8x128xf32>, vector<128x128xf32>, vector<8x128xf32> -> vector<8x128xf32>
    %14 = vector.extract_strided_slice %9 {offsets = [0, 0], sizes = [8, 128], strides = [1, 1]} : vector<8x384xf32> to vector<8x128xf32>
    %15 = vector.extract_strided_slice %11 {offsets = [0, 0], sizes = [8, 128], strides = [1, 1]} : vector<8x256xf32> to vector<8x128xf32>
    %16 = arith.addf %14, %15 : vector<8x128xf32>
    %17 = arith.negf %16 : vector<8x128xf32>
    %18 = math.exp %17 : vector<8x128xf32>
    %cst_11 = arith.constant 1.000000e+00 : f32
    %19 = vector.broadcast %cst_11 : f32 to vector<8x128xf32>
    %20 = arith.addf %19, %18 : vector<8x128xf32>
    %21 = arith.divf %19, %20 : vector<8x128xf32>
    %22 = vector.extract_strided_slice %9 {offsets = [0, 128], sizes = [8, 128], strides = [1, 1]} : vector<8x384xf32> to vector<8x128xf32>
    %23 = vector.extract_strided_slice %11 {offsets = [0, 128], sizes = [8, 128], strides = [1, 1]} : vector<8x256xf32> to vector<8x128xf32>
    %24 = arith.addf %22, %23 : vector<8x128xf32>
    %25 = arith.negf %24 : vector<8x128xf32>
    %26 = math.exp %25 : vector<8x128xf32>
    %cst_12 = arith.constant 1.000000e+00 : f32
    %27 = vector.broadcast %cst_12 : f32 to vector<8x128xf32>
    %28 = arith.addf %27, %26 : vector<8x128xf32>
    %29 = arith.divf %27, %28 : vector<8x128xf32>
    %30 = vector.extract_strided_slice %9 {offsets = [0, 256], sizes = [8, 128], strides = [1, 1]} : vector<8x384xf32> to vector<8x128xf32>
    %31 = arith.addf %13, %5 : vector<8x128xf32>
    %32 = arith.mulf %21, %31 : vector<8x128xf32>
    %33 = arith.addf %30, %32 : vector<8x128xf32>
    %34 = math.tanh %33 : vector<8x128xf32>
    %35 = arith.subf %6, %34 : vector<8x128xf32>
    %36 = arith.mulf %29, %35 : vector<8x128xf32>
    %37 = arith.addf %34, %36 : vector<8x128xf32>
    %c1_i32 = arith.constant 1 : i32
    %38 = arith.index_cast %c1_i32 : i32 to index
    %c0_13 = arith.constant 0 : index
    %c0_14 = arith.constant 0 : index
    %39 = vector.load %arg2[%38, %c0_13, %c0_14] : memref<8x8x384xf32, #tpu.memory_space<vmem>>, vector<1x8x384xf32>
    %40 = vector.shape_cast %39 : vector<1x8x384xf32> to vector<8x384xf32>
    %c0_15 = arith.constant 0 : index
    %c0_16 = arith.constant 0 : index
    %41 = vector.load %arg3[%c0_15, %c0_16] : memref<128x384xf32, #tpu.memory_space<vmem>>, vector<128x256xf32>
    %cst_17 = arith.constant dense<0.000000e+00> : vector<8x256xf32>
    %42 = tpu.matmul %37, %41, %cst_17 {dimension_numbers = #tpu.dot_dimension_numbers<[1], [0], [0], [1], [0, 0, 1, 1], [], []>} : vector<8x128xf32>, vector<128x256xf32>, vector<8x256xf32> -> vector<8x256xf32>
    %c0_18 = arith.constant 0 : index
    %c256_19 = arith.constant 256 : index
    %43 = vector.load %arg3[%c0_18, %c256_19] : memref<128x384xf32, #tpu.memory_space<vmem>>, vector<128x128xf32>
    %cst_20 = arith.constant dense<0.000000e+00> : vector<8x128xf32>
    %44 = tpu.matmul %37, %43, %cst_20 {dimension_numbers = #tpu.dot_dimension_numbers<[1], [0], [0], [1], [0, 0, 1, 1], [], []>} : vector<8x128xf32>, vector<128x128xf32>, vector<8x128xf32> -> vector<8x128xf32>
    %45 = vector.extract_strided_slice %40 {offsets = [0, 0], sizes = [8, 128], strides = [1, 1]} : vector<8x384xf32> to vector<8x128xf32>
    %46 = vector.extract_strided_slice %42 {offsets = [0, 0], sizes = [8, 128], strides = [1, 1]} : vector<8x256xf32> to vector<8x128xf32>
    %47 = arith.addf %45, %46 : vector<8x128xf32>
    %48 = arith.negf %47 : vector<8x128xf32>
    %49 = math.exp %48 : vector<8x128xf32>
    %cst_21 = arith.constant 1.000000e+00 : f32
    %50 = vector.broadcast %cst_21 : f32 to vector<8x128xf32>
    %51 = arith.addf %50, %49 : vector<8x128xf32>
    %52 = arith.divf %50, %51 : vector<8x128xf32>
    %53 = vector.extract_strided_slice %40 {offsets = [0, 128], sizes = [8, 128], strides = [1, 1]} : vector<8x384xf32> to vector<8x128xf32>
    %54 = vector.extract_strided_slice %42 {offsets = [0, 128], sizes = [8, 128], strides = [1, 1]} : vector<8x256xf32> to vector<8x128xf32>
    %55 = arith.addf %53, %54 : vector<8x128xf32>
    %56 = arith.negf %55 : vector<8x128xf32>
    %57 = math.exp %56 : vector<8x128xf32>
    %cst_22 = arith.constant 1.000000e+00 : f32
    %58 = vector.broadcast %cst_22 : f32 to vector<8x128xf32>
    %59 = arith.addf %58, %57 : vector<8x128xf32>
    %60 = arith.divf %58, %59 : vector<8x128xf32>
    %61 = vector.extract_strided_slice %40 {offsets = [0, 256], sizes = [8, 128], strides = [1, 1]} : vector<8x384xf32> to vector<8x128xf32>
    %62 = arith.addf %44, %5 : vector<8x128xf32>
    %63 = arith.mulf %52, %62 : vector<8x128xf32>
    %64 = arith.addf %61, %63 : vector<8x128xf32>
    %65 = math.tanh %64 : vector<8x128xf32>
    %66 = arith.subf %37, %65 : vector<8x128xf32>
    %67 = arith.mulf %60, %66 : vector<8x128xf32>
    %68 = arith.addf %65, %67 : vector<8x128xf32>
    %c2_i32 = arith.constant 2 : i32
    %69 = arith.index_cast %c2_i32 : i32 to index
    %c0_23 = arith.constant 0 : index
    %c0_24 = arith.constant 0 : index
    %70 = vector.load %arg2[%69, %c0_23, %c0_24] : memref<8x8x384xf32, #tpu.memory_space<vmem>>, vector<1x8x384xf32>
    %71 = vector.shape_cast %70 : vector<1x8x384xf32> to vector<8x384xf32>
    %c0_25 = arith.constant 0 : index
    %c0_26 = arith.constant 0 : index
    %72 = vector.load %arg3[%c0_25, %c0_26] : memref<128x384xf32, #tpu.memory_space<vmem>>, vector<128x256xf32>
    %cst_27 = arith.constant dense<0.000000e+00> : vector<8x256xf32>
    %73 = tpu.matmul %68, %72, %cst_27 {dimension_numbers = #tpu.dot_dimension_numbers<[1], [0], [0], [1], [0, 0, 1, 1], [], []>} : vector<8x128xf32>, vector<128x256xf32>, vector<8x256xf32> -> vector<8x256xf32>
    %c0_28 = arith.constant 0 : index
    %c256_29 = arith.constant 256 : index
    %74 = vector.load %arg3[%c0_28, %c256_29] : memref<128x384xf32, #tpu.memory_space<vmem>>, vector<128x128xf32>
    %cst_30 = arith.constant dense<0.000000e+00> : vector<8x128xf32>
    %75 = tpu.matmul %68, %74, %cst_30 {dimension_numbers = #tpu.dot_dimension_numbers<[1], [0], [0], [1], [0, 0, 1, 1], [], []>} : vector<8x128xf32>, vector<128x128xf32>, vector<8x128xf32> -> vector<8x128xf32>
    %76 = vector.extract_strided_slice %71 {offsets = [0, 0], sizes = [8, 128], strides = [1, 1]} : vector<8x384xf32> to vector<8x128xf32>
    %77 = vector.extract_strided_slice %73 {offsets = [0, 0], sizes = [8, 128], strides = [1, 1]} : vector<8x256xf32> to vector<8x128xf32>
    %78 = arith.addf %76, %77 : vector<8x128xf32>
    %79 = arith.negf %78 : vector<8x128xf32>
    %80 = math.exp %79 : vector<8x128xf32>
    %cst_31 = arith.constant 1.000000e+00 : f32
    %81 = vector.broadcast %cst_31 : f32 to vector<8x128xf32>
    %82 = arith.addf %81, %80 : vector<8x128xf32>
    %83 = arith.divf %81, %82 : vector<8x128xf32>
    %84 = vector.extract_strided_slice %71 {offsets = [0, 128], sizes = [8, 128], strides = [1, 1]} : vector<8x384xf32> to vector<8x128xf32>
    %85 = vector.extract_strided_slice %73 {offsets = [0, 128], sizes = [8, 128], strides = [1, 1]} : vector<8x256xf32> to vector<8x128xf32>
    %86 = arith.addf %84, %85 : vector<8x128xf32>
    %87 = arith.negf %86 : vector<8x128xf32>
    %88 = math.exp %87 : vector<8x128xf32>
    %cst_32 = arith.constant 1.000000e+00 : f32
    %89 = vector.broadcast %cst_32 : f32 to vector<8x128xf32>
    %90 = arith.addf %89, %88 : vector<8x128xf32>
    %91 = arith.divf %89, %90 : vector<8x128xf32>
    %92 = vector.extract_strided_slice %71 {offsets = [0, 256], sizes = [8, 128], strides = [1, 1]} : vector<8x384xf32> to vector<8x128xf32>
    %93 = arith.addf %75, %5 : vector<8x128xf32>
    %94 = arith.mulf %83, %93 : vector<8x128xf32>
    %95 = arith.addf %92, %94 : vector<8x128xf32>
    %96 = math.tanh %95 : vector<8x128xf32>
    %97 = arith.subf %68, %96 : vector<8x128xf32>
    %98 = arith.mulf %91, %97 : vector<8x128xf32>
    %99 = arith.addf %96, %98 : vector<8x128xf32>
    %c3_i32 = arith.constant 3 : i32
    %100 = arith.index_cast %c3_i32 : i32 to index
    %c0_33 = arith.constant 0 : index
    %c0_34 = arith.constant 0 : index
    %101 = vector.load %arg2[%100, %c0_33, %c0_34] : memref<8x8x384xf32, #tpu.memory_space<vmem>>, vector<1x8x384xf32>
    %102 = vector.shape_cast %101 : vector<1x8x384xf32> to vector<8x384xf32>
    %c0_35 = arith.constant 0 : index
    %c0_36 = arith.constant 0 : index
    %103 = vector.load %arg3[%c0_35, %c0_36] : memref<128x384xf32, #tpu.memory_space<vmem>>, vector<128x256xf32>
    %cst_37 = arith.constant dense<0.000000e+00> : vector<8x256xf32>
    %104 = tpu.matmul %99, %103, %cst_37 {dimension_numbers = #tpu.dot_dimension_numbers<[1], [0], [0], [1], [0, 0, 1, 1], [], []>} : vector<8x128xf32>, vector<128x256xf32>, vector<8x256xf32> -> vector<8x256xf32>
    %c0_38 = arith.constant 0 : index
    %c256_39 = arith.constant 256 : index
    %105 = vector.load %arg3[%c0_38, %c256_39] : memref<128x384xf32, #tpu.memory_space<vmem>>, vector<128x128xf32>
    %cst_40 = arith.constant dense<0.000000e+00> : vector<8x128xf32>
    %106 = tpu.matmul %99, %105, %cst_40 {dimension_numbers = #tpu.dot_dimension_numbers<[1], [0], [0], [1], [0, 0, 1, 1], [], []>} : vector<8x128xf32>, vector<128x128xf32>, vector<8x128xf32> -> vector<8x128xf32>
    %107 = vector.extract_strided_slice %102 {offsets = [0, 0], sizes = [8, 128], strides = [1, 1]} : vector<8x384xf32> to vector<8x128xf32>
    %108 = vector.extract_strided_slice %104 {offsets = [0, 0], sizes = [8, 128], strides = [1, 1]} : vector<8x256xf32> to vector<8x128xf32>
    %109 = arith.addf %107, %108 : vector<8x128xf32>
    %110 = arith.negf %109 : vector<8x128xf32>
    %111 = math.exp %110 : vector<8x128xf32>
    %cst_41 = arith.constant 1.000000e+00 : f32
    %112 = vector.broadcast %cst_41 : f32 to vector<8x128xf32>
    %113 = arith.addf %112, %111 : vector<8x128xf32>
    %114 = arith.divf %112, %113 : vector<8x128xf32>
    %115 = vector.extract_strided_slice %102 {offsets = [0, 128], sizes = [8, 128], strides = [1, 1]} : vector<8x384xf32> to vector<8x128xf32>
    %116 = vector.extract_strided_slice %104 {offsets = [0, 128], sizes = [8, 128], strides = [1, 1]} : vector<8x256xf32> to vector<8x128xf32>
    %117 = arith.addf %115, %116 : vector<8x128xf32>
    %118 = arith.negf %117 : vector<8x128xf32>
    %119 = math.exp %118 : vector<8x128xf32>
    %cst_42 = arith.constant 1.000000e+00 : f32
    %120 = vector.broadcast %cst_42 : f32 to vector<8x128xf32>
    %121 = arith.addf %120, %119 : vector<8x128xf32>
    %122 = arith.divf %120, %121 : vector<8x128xf32>
    %123 = vector.extract_strided_slice %102 {offsets = [0, 256], sizes = [8, 128], strides = [1, 1]} : vector<8x384xf32> to vector<8x128xf32>
    %124 = arith.addf %106, %5 : vector<8x128xf32>
    %125 = arith.mulf %114, %124 : vector<8x128xf32>
    %126 = arith.addf %123, %125 : vector<8x128xf32>
    %127 = math.tanh %126 : vector<8x128xf32>
    %128 = arith.subf %99, %127 : vector<8x128xf32>
    %129 = arith.mulf %122, %128 : vector<8x128xf32>
    %130 = arith.addf %127, %129 : vector<8x128xf32>
    %c4_i32 = arith.constant 4 : i32
    %131 = arith.index_cast %c4_i32 : i32 to index
    %c0_43 = arith.constant 0 : index
    %c0_44 = arith.constant 0 : index
    %132 = vector.load %arg2[%131, %c0_43, %c0_44] : memref<8x8x384xf32, #tpu.memory_space<vmem>>, vector<1x8x384xf32>
    %133 = vector.shape_cast %132 : vector<1x8x384xf32> to vector<8x384xf32>
    %c0_45 = arith.constant 0 : index
    %c0_46 = arith.constant 0 : index
    %134 = vector.load %arg3[%c0_45, %c0_46] : memref<128x384xf32, #tpu.memory_space<vmem>>, vector<128x256xf32>
    %cst_47 = arith.constant dense<0.000000e+00> : vector<8x256xf32>
    %135 = tpu.matmul %130, %134, %cst_47 {dimension_numbers = #tpu.dot_dimension_numbers<[1], [0], [0], [1], [0, 0, 1, 1], [], []>} : vector<8x128xf32>, vector<128x256xf32>, vector<8x256xf32> -> vector<8x256xf32>
    %c0_48 = arith.constant 0 : index
    %c256_49 = arith.constant 256 : index
    %136 = vector.load %arg3[%c0_48, %c256_49] : memref<128x384xf32, #tpu.memory_space<vmem>>, vector<128x128xf32>
    %cst_50 = arith.constant dense<0.000000e+00> : vector<8x128xf32>
    %137 = tpu.matmul %130, %136, %cst_50 {dimension_numbers = #tpu.dot_dimension_numbers<[1], [0], [0], [1], [0, 0, 1, 1], [], []>} : vector<8x128xf32>, vector<128x128xf32>, vector<8x128xf32> -> vector<8x128xf32>
    %138 = vector.extract_strided_slice %133 {offsets = [0, 0], sizes = [8, 128], strides = [1, 1]} : vector<8x384xf32> to vector<8x128xf32>
    %139 = vector.extract_strided_slice %135 {offsets = [0, 0], sizes = [8, 128], strides = [1, 1]} : vector<8x256xf32> to vector<8x128xf32>
    %140 = arith.addf %138, %139 : vector<8x128xf32>
    %141 = arith.negf %140 : vector<8x128xf32>
    %142 = math.exp %141 : vector<8x128xf32>
    %cst_51 = arith.constant 1.000000e+00 : f32
    %143 = vector.broadcast %cst_51 : f32 to vector<8x128xf32>
    %144 = arith.addf %143, %142 : vector<8x128xf32>
    %145 = arith.divf %143, %144 : vector<8x128xf32>
    %146 = vector.extract_strided_slice %133 {offsets = [0, 128], sizes = [8, 128], strides = [1, 1]} : vector<8x384xf32> to vector<8x128xf32>
    %147 = vector.extract_strided_slice %135 {offsets = [0, 128], sizes = [8, 128], strides = [1, 1]} : vector<8x256xf32> to vector<8x128xf32>
    %148 = arith.addf %146, %147 : vector<8x128xf32>
    %149 = arith.negf %148 : vector<8x128xf32>
    %150 = math.exp %149 : vector<8x128xf32>
    %cst_52 = arith.constant 1.000000e+00 : f32
    %151 = vector.broadcast %cst_52 : f32 to vector<8x128xf32>
    %152 = arith.addf %151, %150 : vector<8x128xf32>
    %153 = arith.divf %151, %152 : vector<8x128xf32>
    %154 = vector.extract_strided_slice %133 {offsets = [0, 256], sizes = [8, 128], strides = [1, 1]} : vector<8x384xf32> to vector<8x128xf32>
    %155 = arith.addf %137, %5 : vector<8x128xf32>
    %156 = arith.mulf %145, %155 : vector<8x128xf32>
    %157 = arith.addf %154, %156 : vector<8x128xf32>
    %158 = math.tanh %157 : vector<8x128xf32>
    %159 = arith.subf %130, %158 : vector<8x128xf32>
    %160 = arith.mulf %153, %159 : vector<8x128xf32>
    %161 = arith.addf %158, %160 : vector<8x128xf32>
    %c5_i32 = arith.constant 5 : i32
    %162 = arith.index_cast %c5_i32 : i32 to index
    %c0_53 = arith.constant 0 : index
    %c0_54 = arith.constant 0 : index
    %163 = vector.load %arg2[%162, %c0_53, %c0_54] : memref<8x8x384xf32, #tpu.memory_space<vmem>>, vector<1x8x384xf32>
    %164 = vector.shape_cast %163 : vector<1x8x384xf32> to vector<8x384xf32>
    %c0_55 = arith.constant 0 : index
    %c0_56 = arith.constant 0 : index
    %165 = vector.load %arg3[%c0_55, %c0_56] : memref<128x384xf32, #tpu.memory_space<vmem>>, vector<128x256xf32>
    %cst_57 = arith.constant dense<0.000000e+00> : vector<8x256xf32>
    %166 = tpu.matmul %161, %165, %cst_57 {dimension_numbers = #tpu.dot_dimension_numbers<[1], [0], [0], [1], [0, 0, 1, 1], [], []>} : vector<8x128xf32>, vector<128x256xf32>, vector<8x256xf32> -> vector<8x256xf32>
    %c0_58 = arith.constant 0 : index
    %c256_59 = arith.constant 256 : index
    %167 = vector.load %arg3[%c0_58, %c256_59] : memref<128x384xf32, #tpu.memory_space<vmem>>, vector<128x128xf32>
    %cst_60 = arith.constant dense<0.000000e+00> : vector<8x128xf32>
    %168 = tpu.matmul %161, %167, %cst_60 {dimension_numbers = #tpu.dot_dimension_numbers<[1], [0], [0], [1], [0, 0, 1, 1], [], []>} : vector<8x128xf32>, vector<128x128xf32>, vector<8x128xf32> -> vector<8x128xf32>
    %169 = vector.extract_strided_slice %164 {offsets = [0, 0], sizes = [8, 128], strides = [1, 1]} : vector<8x384xf32> to vector<8x128xf32>
    %170 = vector.extract_strided_slice %166 {offsets = [0, 0], sizes = [8, 128], strides = [1, 1]} : vector<8x256xf32> to vector<8x128xf32>
    %171 = arith.addf %169, %170 : vector<8x128xf32>
    %172 = arith.negf %171 : vector<8x128xf32>
    %173 = math.exp %172 : vector<8x128xf32>
    %cst_61 = arith.constant 1.000000e+00 : f32
    %174 = vector.broadcast %cst_61 : f32 to vector<8x128xf32>
    %175 = arith.addf %174, %173 : vector<8x128xf32>
    %176 = arith.divf %174, %175 : vector<8x128xf32>
    %177 = vector.extract_strided_slice %164 {offsets = [0, 128], sizes = [8, 128], strides = [1, 1]} : vector<8x384xf32> to vector<8x128xf32>
    %178 = vector.extract_strided_slice %166 {offsets = [0, 128], sizes = [8, 128], strides = [1, 1]} : vector<8x256xf32> to vector<8x128xf32>
    %179 = arith.addf %177, %178 : vector<8x128xf32>
    %180 = arith.negf %179 : vector<8x128xf32>
    %181 = math.exp %180 : vector<8x128xf32>
    %cst_62 = arith.constant 1.000000e+00 : f32
    %182 = vector.broadcast %cst_62 : f32 to vector<8x128xf32>
    %183 = arith.addf %182, %181 : vector<8x128xf32>
    %184 = arith.divf %182, %183 : vector<8x128xf32>
    %185 = vector.extract_strided_slice %164 {offsets = [0, 256], sizes = [8, 128], strides = [1, 1]} : vector<8x384xf32> to vector<8x128xf32>
    %186 = arith.addf %168, %5 : vector<8x128xf32>
    %187 = arith.mulf %176, %186 : vector<8x128xf32>
    %188 = arith.addf %185, %187 : vector<8x128xf32>
    %189 = math.tanh %188 : vector<8x128xf32>
    %190 = arith.subf %161, %189 : vector<8x128xf32>
    %191 = arith.mulf %184, %190 : vector<8x128xf32>
    %192 = arith.addf %189, %191 : vector<8x128xf32>
    %c6_i32 = arith.constant 6 : i32
    %193 = arith.index_cast %c6_i32 : i32 to index
    %c0_63 = arith.constant 0 : index
    %c0_64 = arith.constant 0 : index
    %194 = vector.load %arg2[%193, %c0_63, %c0_64] : memref<8x8x384xf32, #tpu.memory_space<vmem>>, vector<1x8x384xf32>
    %195 = vector.shape_cast %194 : vector<1x8x384xf32> to vector<8x384xf32>
    %c0_65 = arith.constant 0 : index
    %c0_66 = arith.constant 0 : index
    %196 = vector.load %arg3[%c0_65, %c0_66] : memref<128x384xf32, #tpu.memory_space<vmem>>, vector<128x256xf32>
    %cst_67 = arith.constant dense<0.000000e+00> : vector<8x256xf32>
    %197 = tpu.matmul %192, %196, %cst_67 {dimension_numbers = #tpu.dot_dimension_numbers<[1], [0], [0], [1], [0, 0, 1, 1], [], []>} : vector<8x128xf32>, vector<128x256xf32>, vector<8x256xf32> -> vector<8x256xf32>
    %c0_68 = arith.constant 0 : index
    %c256_69 = arith.constant 256 : index
    %198 = vector.load %arg3[%c0_68, %c256_69] : memref<128x384xf32, #tpu.memory_space<vmem>>, vector<128x128xf32>
    %cst_70 = arith.constant dense<0.000000e+00> : vector<8x128xf32>
    %199 = tpu.matmul %192, %198, %cst_70 {dimension_numbers = #tpu.dot_dimension_numbers<[1], [0], [0], [1], [0, 0, 1, 1], [], []>} : vector<8x128xf32>, vector<128x128xf32>, vector<8x128xf32> -> vector<8x128xf32>
    %200 = vector.extract_strided_slice %195 {offsets = [0, 0], sizes = [8, 128], strides = [1, 1]} : vector<8x384xf32> to vector<8x128xf32>
    %201 = vector.extract_strided_slice %197 {offsets = [0, 0], sizes = [8, 128], strides = [1, 1]} : vector<8x256xf32> to vector<8x128xf32>
    %202 = arith.addf %200, %201 : vector<8x128xf32>
    %203 = arith.negf %202 : vector<8x128xf32>
    %204 = math.exp %203 : vector<8x128xf32>
    %cst_71 = arith.constant 1.000000e+00 : f32
    %205 = vector.broadcast %cst_71 : f32 to vector<8x128xf32>
    %206 = arith.addf %205, %204 : vector<8x128xf32>
    %207 = arith.divf %205, %206 : vector<8x128xf32>
    %208 = vector.extract_strided_slice %195 {offsets = [0, 128], sizes = [8, 128], strides = [1, 1]} : vector<8x384xf32> to vector<8x128xf32>
    %209 = vector.extract_strided_slice %197 {offsets = [0, 128], sizes = [8, 128], strides = [1, 1]} : vector<8x256xf32> to vector<8x128xf32>
    %210 = arith.addf %208, %209 : vector<8x128xf32>
    %211 = arith.negf %210 : vector<8x128xf32>
    %212 = math.exp %211 : vector<8x128xf32>
    %cst_72 = arith.constant 1.000000e+00 : f32
    %213 = vector.broadcast %cst_72 : f32 to vector<8x128xf32>
    %214 = arith.addf %213, %212 : vector<8x128xf32>
    %215 = arith.divf %213, %214 : vector<8x128xf32>
    %216 = vector.extract_strided_slice %195 {offsets = [0, 256], sizes = [8, 128], strides = [1, 1]} : vector<8x384xf32> to vector<8x128xf32>
    %217 = arith.addf %199, %5 : vector<8x128xf32>
    %218 = arith.mulf %207, %217 : vector<8x128xf32>
    %219 = arith.addf %216, %218 : vector<8x128xf32>
    %220 = math.tanh %219 : vector<8x128xf32>
    %221 = arith.subf %192, %220 : vector<8x128xf32>
    %222 = arith.mulf %215, %221 : vector<8x128xf32>
    %223 = arith.addf %220, %222 : vector<8x128xf32>
    %c7_i32 = arith.constant 7 : i32
    %224 = arith.index_cast %c7_i32 : i32 to index
    %c0_73 = arith.constant 0 : index
    %c0_74 = arith.constant 0 : index
    %225 = vector.load %arg2[%224, %c0_73, %c0_74] : memref<8x8x384xf32, #tpu.memory_space<vmem>>, vector<1x8x384xf32>
    %226 = vector.shape_cast %225 : vector<1x8x384xf32> to vector<8x384xf32>
    %c0_75 = arith.constant 0 : index
    %c0_76 = arith.constant 0 : index
    %227 = vector.load %arg3[%c0_75, %c0_76] : memref<128x384xf32, #tpu.memory_space<vmem>>, vector<128x256xf32>
    %cst_77 = arith.constant dense<0.000000e+00> : vector<8x256xf32>
    %228 = tpu.matmul %223, %227, %cst_77 {dimension_numbers = #tpu.dot_dimension_numbers<[1], [0], [0], [1], [0, 0, 1, 1], [], []>} : vector<8x128xf32>, vector<128x256xf32>, vector<8x256xf32> -> vector<8x256xf32>
    %c0_78 = arith.constant 0 : index
    %c256_79 = arith.constant 256 : index
    %229 = vector.load %arg3[%c0_78, %c256_79] : memref<128x384xf32, #tpu.memory_space<vmem>>, vector<128x128xf32>
    %cst_80 = arith.constant dense<0.000000e+00> : vector<8x128xf32>
    %230 = tpu.matmul %223, %229, %cst_80 {dimension_numbers = #tpu.dot_dimension_numbers<[1], [0], [0], [1], [0, 0, 1, 1], [], []>} : vector<8x128xf32>, vector<128x128xf32>, vector<8x128xf32> -> vector<8x128xf32>
    %231 = vector.extract_strided_slice %226 {offsets = [0, 0], sizes = [8, 128], strides = [1, 1]} : vector<8x384xf32> to vector<8x128xf32>
    %232 = vector.extract_strided_slice %228 {offsets = [0, 0], sizes = [8, 128], strides = [1, 1]} : vector<8x256xf32> to vector<8x128xf32>
    %233 = arith.addf %231, %232 : vector<8x128xf32>
    %234 = arith.negf %233 : vector<8x128xf32>
    %235 = math.exp %234 : vector<8x128xf32>
    %cst_81 = arith.constant 1.000000e+00 : f32
    %236 = vector.broadcast %cst_81 : f32 to vector<8x128xf32>
    %237 = arith.addf %236, %235 : vector<8x128xf32>
    %238 = arith.divf %236, %237 : vector<8x128xf32>
    %239 = vector.extract_strided_slice %226 {offsets = [0, 128], sizes = [8, 128], strides = [1, 1]} : vector<8x384xf32> to vector<8x128xf32>
    %240 = vector.extract_strided_slice %228 {offsets = [0, 128], sizes = [8, 128], strides = [1, 1]} : vector<8x256xf32> to vector<8x128xf32>
    %241 = arith.addf %239, %240 : vector<8x128xf32>
    %242 = arith.negf %241 : vector<8x128xf32>
    %243 = math.exp %242 : vector<8x128xf32>
    %cst_82 = arith.constant 1.000000e+00 : f32
    %244 = vector.broadcast %cst_82 : f32 to vector<8x128xf32>
    %245 = arith.addf %244, %243 : vector<8x128xf32>
    %246 = arith.divf %244, %245 : vector<8x128xf32>
    %247 = vector.extract_strided_slice %226 {offsets = [0, 256], sizes = [8, 128], strides = [1, 1]} : vector<8x384xf32> to vector<8x128xf32>
    %248 = arith.addf %230, %5 : vector<8x128xf32>
    %249 = arith.mulf %238, %248 : vector<8x128xf32>
    %250 = arith.addf %247, %249 : vector<8x128xf32>
    %251 = math.tanh %250 : vector<8x128xf32>
    %252 = arith.subf %223, %251 : vector<8x128xf32>
    %253 = arith.mulf %246, %252 : vector<8x128xf32>
    %254 = arith.addf %251, %253 : vector<8x128xf32>
    %c8_i32 = arith.constant 8 : i32
    %c0_83 = arith.constant 0 : index
    %c0_84 = arith.constant 0 : index
    %255 = vector.load %arg8[%c0_83, %c0_84] : memref<8x128xf32, #tpu.memory_space<vmem>>, vector<8x128xf32>
    tpu.vector_store %arg8[%c0_83, %c0_84], %254 {strides = array<i32>} : memref<8x128xf32, #tpu.memory_space<vmem>>, vector<8x128xf32>,
    %c0_i32_85 = arith.constant 0 : i32
    %256 = arith.cmpi eq, %arg1, %c0_i32_85 : i32
    %257 = arith.extui %256 : i1 to i32
    %c0_i32_86 = arith.constant 0 : i32
    %258 = arith.cmpi ne, %257, %c0_i32_86 : i32
    scf.if %258 {
      %c0_87 = arith.constant 0 : index
      %c0_88 = arith.constant 0 : index
      %259 = vector.load %arg5[%c0_87, %c0_88] : memref<128x128xf32, #tpu.memory_space<vmem>>, vector<128x128xf32>
      %cst_89 = arith.constant dense<0.000000e+00> : vector<8x128xf32>
      %260 = tpu.matmul %254, %259, %cst_89 {dimension_numbers = #tpu.dot_dimension_numbers<[1], [0], [0], [1], [0, 0, 1, 1], [], []>} : vector<8x128xf32>, vector<128x128xf32>, vector<8x128xf32> -> vector<8x128xf32>
      %c0_90 = arith.constant 0 : index
      %c0_91 = arith.constant 0 : index
      %261 = vector.load %arg6[%c0_90, %c0_91] : memref<1x128xf32, #tpu.memory_space<vmem>>, vector<1x128xf32>
      %262 = vector.broadcast %261 : vector<1x128xf32> to vector<8x128xf32>
      %263 = arith.addf %260, %262 : vector<8x128xf32>
      %c0_92 = arith.constant 0 : index
      %c0_93 = arith.constant 0 : index
      %264 = vector.load %arg7[%c0_92, %c0_93] : memref<8x128xf32, #tpu.memory_space<vmem>>, vector<8x128xf32>
      tpu.vector_store %arg7[%c0_92, %c0_93], %263 {strides = array<i32>} : memref<8x128xf32, #tpu.memory_space<vmem>>, vector<8x128xf32>,
    } else {
    }
    return
  }
  func.func @transform_0(%arg0: i32, %arg1: i32) -> (i32, i32, i32) {
    %c0_i32 = arith.constant 0 : i32
    %c0_i32_0 = arith.constant 0 : i32
    return %arg1, %arg0, %c0_i32 : i32, i32, i32
  }
  func.func @transform_1(%arg0: i32, %arg1: i32) -> (i32, i32) {
    %c0_i32 = arith.constant 0 : i32
    %c0_i32_0 = arith.constant 0 : i32
    %c0_i32_1 = arith.constant 0 : i32
    return %c0_i32, %c0_i32_0 : i32, i32
  }
  func.func @transform_2(%arg0: i32, %arg1: i32) -> (i32, i32) {
    %c0_i32 = arith.constant 0 : i32
    %c0_i32_0 = arith.constant 0 : i32
    %c0_i32_1 = arith.constant 0 : i32
    return %c0_i32, %c0_i32_0 : i32, i32
  }
  func.func @transform_3(%arg0: i32, %arg1: i32) -> (i32, i32) {
    %c0_i32 = arith.constant 0 : i32
    %c0_i32_0 = arith.constant 0 : i32
    %c0_i32_1 = arith.constant 0 : i32
    return %c0_i32, %c0_i32_0 : i32, i32
  }
  func.func @transform_4(%arg0: i32, %arg1: i32) -> (i32, i32) {
    %c0_i32 = arith.constant 0 : i32
    %c0_i32_0 = arith.constant 0 : i32
    %c0_i32_1 = arith.constant 0 : i32
    return %c0_i32, %c0_i32_0 : i32, i32
  }
  func.func @transform_5(%arg0: i32, %arg1: i32) -> (i32, i32) {
    %c0_i32 = arith.constant 0 : i32
    %c0_i32_0 = arith.constant 0 : i32
    return %arg0, %c0_i32 : i32, i32
  }
}

</mosaic_0001>

<llo_original>
// kernel: tpu_custom_call.1
$region0: #{tpu_custom_call.1}
  #allocation0 [shape = 'u32[]', space=smem, size = 0x4, offset = 0x4, fixed_abs, tag = 'smem constant byte address 0x4 - core index']
  #allocation1 [shape = 'u32[144,128]{1,0:T(1,128)}', space=vmem, size = 0x12000, scoped, tag = 'internal scratch']
  #allocation2 [shape = 'f32[8,128]{1,0:T(8,128)}', space=vmem, size = 0x1000, scoped, tag = 'scratch operand']
  %s0 = inlined_call_operand.hbm [shape: f32[8,8,384], index: 0, kind: input, shape index: {}]
  %s1 = inlined_call_operand.hbm [shape: f32[128,384], index: 1, kind: input, shape index: {}]
  %s2 = inlined_call_operand.vmem [shape: f32[1,128], index: 2, kind: input, shape index: {}]
  %s3 = inlined_call_operand.hbm [shape: f32[128,128], index: 3, kind: input, shape index: {}]
  %s4 = inlined_call_operand.vmem [shape: f32[1,128], index: 4, kind: input, shape index: {}]
  %s5 = inlined_call_operand.hbm [shape: f32[8,128], index: 5, kind: output, shape index: {}]
  %s6 = sld [smem:[#allocation0]]
  $region50: #{tpu_custom_call.1} parent=0
    _
  %s8 = ssub.s32 1, %s6
  %s9 = scalar_select 0, %s8, %s6
  $region1: #{tpu_custom_call.1} parent=0
    #allocation3 [shape = 'u8[98304]{0}', space=vmem, size = 0x18000, scoped, tag = 'input window, operand 0, single buffered']
    #allocation4 [shape = 's32[1]{0}', space=sflag, size = 0x4, scoped, tag = 'scoped memory for tpu_custom_call.1']
    #allocation5 [shape = 's32[1]{0}', space=sflag, size = 0x4, scoped, tag = 'scoped memory for tpu_custom_call.1']
    #allocation6 [shape = 'u8[196608]{0}', space=vmem, size = 0x30000, scoped, tag = 'input window, operand 1, single buffered']
    #allocation7 [shape = 's32[1]{0}', space=sflag, size = 0x4, scoped, tag = 'scoped memory for tpu_custom_call.1']
    #allocation8 [shape = 'u8[65536]{0}', space=vmem, size = 0x10000, scoped, tag = 'input window, operand 3, single buffered']
    #allocation9 [shape = 'u8[4096]{0}', space=vmem, size = 0x1000, scoped, tag = 'output window, operand 0, single buffered']
    %10 = vsyncpa [#allocation4], 0
    %11 = vsyncpa [#allocation7], 0
    %12 = vsyncpa [#allocation5], 0
    // Predicated region
    $region2: #{tpu_custom_call.1} parent=1 // pred_check
      _
    $region3: #{tpu_custom_call.1} parent=1 // pred_check_branch
      %14 = sbr.rel (0) target = $region5
    $region4: #{tpu_custom_call.1} parent=1 // pred_region
      %s16 = ssub.s32 3072, 3072
      %17 = vsyncadd [#allocation4], %s16
      %s18 = sshll.u32 [#allocation3], 4
      %s19 = int_to_ptr.vmem [resolvable:$true] %s18
      %24 = dma.hbm_to_vmem [thread:$0]  %s0, 3072, %s19, [#allocation4], 384, 384, 24
    $region5: #{tpu_custom_call.1} parent=1 // pred_fallthru
      _
    // Predicated region
    $region6: #{tpu_custom_call.1} parent=1 // pred_check
      _
    $region7: #{tpu_custom_call.1} parent=1 // pred_check_branch
      %26 = sbr.rel (0) target = $region9
    $region8: #{tpu_custom_call.1} parent=1 // pred_region
      %s28 = ssub.s32 6144, 6144
      %29 = vsyncadd [#allocation7], %s28
      %s30 = sshll.u32 [#allocation6], 4
      %s31 = int_to_ptr.vmem [resolvable:$true] %s30
      %36 = dma.hbm_to_vmem [thread:$0]  %s1, 6144, %s31, [#allocation7], 384, 384, 24
    $region9: #{tpu_custom_call.1} parent=1 // pred_fallthru
      _
    // Predicated region
    $region10: #{tpu_custom_call.1} parent=1 // pred_check
      _
    $region11: #{tpu_custom_call.1} parent=1 // pred_check_branch
      %38 = sbr.rel (0) target = $region13
    $region12: #{tpu_custom_call.1} parent=1 // pred_region
      _
    $region13: #{tpu_custom_call.1} parent=1 // pred_fallthru
      _
    // Predicated region
    $region14: #{tpu_custom_call.1} parent=1 // pred_check
      _
    $region15: #{tpu_custom_call.1} parent=1 // pred_check_branch
      %40 = sbr.rel (0) target = $region17
    $region16: #{tpu_custom_call.1} parent=1 // pred_region
      %s42 = ssub.s32 2048, 2048
      %43 = vsyncadd [#allocation7], %s42
      %s44 = sshll.u32 [#allocation8], 4
      %s45 = int_to_ptr.vmem [resolvable:$true] %s44
      %50 = dma.hbm_to_vmem [thread:$0]  %s3, 2048, %s45, [#allocation7], 128, 128, 8
    $region17: #{tpu_custom_call.1} parent=1 // pred_fallthru
      _
    // Predicated region
    $region18: #{tpu_custom_call.1} parent=1 // pred_check
      _
    $region19: #{tpu_custom_call.1} parent=1 // pred_check_branch
      %52 = sbr.rel (0) target = $region21
    $region20: #{tpu_custom_call.1} parent=1 // pred_region
      _
    $region21: #{tpu_custom_call.1} parent=1 // pred_fallthru
      _
    // Predicated region
    $region22: #{tpu_custom_call.1} parent=1 // pred_check
      _
    $region23: #{tpu_custom_call.1} parent=1 // pred_check_branch
      %54 = sbr.rel (0) target = $region25
    $region24: #{tpu_custom_call.1} parent=1 // pred_region
      %55 = dma.done [#allocation4], 3072
    $region25: #{tpu_custom_call.1} parent=1 // pred_fallthru
      _
    // Predicated region
    $region26: #{tpu_custom_call.1} parent=1 // pred_check
      _
    $region27: #{tpu_custom_call.1} parent=1 // pred_check_branch
      %57 = sbr.rel (0) target = $region29
    $region28: #{tpu_custom_call.1} parent=1 // pred_region
      %58 = dma.done [#allocation7], 6144
    $region29: #{tpu_custom_call.1} parent=1 // pred_fallthru
      _
    // Predicated region
    $region30: #{tpu_custom_call.1} parent=1 // pred_check
      _
    $region31: #{tpu_custom_call.1} parent=1 // pred_check_branch
      %60 = sbr.rel (0) target = $region33
    $region32: #{tpu_custom_call.1} parent=1 // pred_region
      %61 = dma.done [#allocation7], 2048
    $region33: #{tpu_custom_call.1} parent=1 // pred_fallthru
      _
    %p62 = scmp.eq.s32.totalorder 0, 0
    // Predicated region
    $region34: #{tpu_custom_call.1} parent=1 // pred_check
      %p63 = pneg %p62
    $region35: #{tpu_custom_call.1} parent=1 // pred_check_branch
      %65 = sbr.rel (%p63) target = $region37
    $region36: #{tpu_custom_call.1} parent=1 // pred_region
      %66 = vst [vmem:[#allocation2] sm:$0xff] 0.0
    $region37: #{tpu_custom_call.1} parent=1 // pred_fallthru
      _
    %v67 = vld [vmem:[%s2] sm:$0x1]
    %v69 = vlaneseq
    %v70 = vshrl.u32 %v69, 7
    %v71 = vsub.s32 0, %v70
    %v72 = vrot.slane %v67, %v71
    %v74 = vld [vmem:[#allocation2] sm:$0xff]
    %v75 = vld [vmem:[#allocation3] sm:$0xff]
    %v76 = vld [vmem:[#allocation3 + $0x8] sm:$0xff]
    %v77 = vld [vmem:[#allocation3 + $0x10] sm:$0xff]
    %v78 = vld [vmem:[#allocation6] sm:$0xff]
    %v79 = vld [vmem:[#allocation6 + $0x8] sm:$0xff]
    %v80 = vld [vmem:[#allocation6 + $0x18] sm:$0xff]
    %v81 = vld [vmem:[#allocation6 + $0x20] sm:$0xff]
    %v82 = vld [vmem:[#allocation6 + $0x30] sm:$0xff]
    %v83 = vld [vmem:[#allocation6 + $0x38] sm:$0xff]
    %v84 = vld [vmem:[#allocation6 + $0x48] sm:$0xff]
    %v85 = vld [vmem:[#allocation6 + $0x50] sm:$0xff]
    %v86 = vld [vmem:[#allocation6 + $0x60] sm:$0xff]
    %v87 = vld [vmem:[#allocation6 + $0x68] sm:$0xff]
    %v88 = vld [vmem:[#allocation6 + $0x78] sm:$0xff]
    %v89 = vld [vmem:[#allocation6 + $0x80] sm:$0xff]
    %v90 = vld [vmem:[#allocation6 + $0x90] sm:$0xff]
    %v91 = vld [vmem:[#allocation6 + $0x98] sm:$0xff]
    %v92 = vld [vmem:[#allocation6 + $0xa8] sm:$0xff]
    %v93 = vld [vmem:[#allocation6 + $0xb0] sm:$0xff]
    %v94 = vld [vmem:[#allocation6 + $0xc0] sm:$0xff]
    %v95 = vld [vmem:[#allocation6 + $0xc8] sm:$0xff]
    %v96 = vld [vmem:[#allocation6 + $0xd8] sm:$0xff]
    %v97 = vld [vmem:[#allocation6 + $0xe0] sm:$0xff]
    %v98 = vld [vmem:[#allocation6 + $0xf0] sm:$0xff]
    %v99 = vld [vmem:[#allocation6 + $0xf8] sm:$0xff]
    %v100 = vld [vmem:[#allocation6 + $0x108] sm:$0xff]
    %v101 = vld [vmem:[#allocation6 + $0x110] sm:$0xff]
    %v102 = vld [vmem:[#allocation6 + $0x120] sm:$0xff]
    %v103 = vld [vmem:[#allocation6 + $0x128] sm:$0xff]
    %v104 = vld [vmem:[#allocation6 + $0x138] sm:$0xff]
    %v105 = vld [vmem:[#allocation6 + $0x140] sm:$0xff]
    %v106 = vld [vmem:[#allocation6 + $0x150] sm:$0xff]
    %v107 = vld [vmem:[#allocation6 + $0x158] sm:$0xff]
    %v108 = vld [vmem:[#allocation6 + $0x168] sm:$0xff]
    %v109 = vld [vmem:[#allocation6 + $0x170] sm:$0xff]
    %110 = vmatprep.subr.mxu0 %v79
    %111 = vmatpush1.msra.mxu0 %v78
    %112 = vmatprep.subr.mxu0 %v81
    %113 = vmatpush1.msra.mxu0 %v80
    %114 = vmatprep.subr.mxu0 %v83
    %115 = vmatpush1.msra.mxu0 %v82
    %116 = vmatprep.subr.mxu0 %v85
    %117 = vmatpush1.msra.mxu0 %v84
    %118 = vmatprep.subr.mxu0 %v87
    %119 = vmatpush1.msra.mxu0 %v86
    %120 = vmatprep.subr.mxu0 %v89
    %121 = vmatpush1.msra.mxu0 %v88
    %122 = vmatprep.subr.mxu0 %v91
    %123 = vmatpush1.msra.mxu0 %v90
    %124 = vmatprep.subr.mxu0 %v93
    %125 = vmatpush1.msra.mxu0 %v92
    %126 = vmatprep.subr.mxu0 %v95
    %127 = vmatpush1.msra.mxu0 %v94
    %128 = vmatprep.subr.mxu0 %v97
    %129 = vmatpush1.msra.mxu0 %v96
    %130 = vmatprep.subr.mxu0 %v99
    %131 = vmatpush1.msra.mxu0 %v98
    %132 = vmatprep.subr.mxu0 %v101
    %133 = vmatpush1.msra.mxu0 %v100
    %134 = vmatprep.subr.mxu0 %v103
    %135 = vmatpush1.msra.mxu0 %v102
    %136 = vmatprep.subr.mxu0 %v105
    %137 = vmatpush1.msra.mxu0 %v104
    %138 = vmatprep.subr.mxu0 %v107
    %139 = vmatpush1.msra.mxu0 %v106
    %140 = vmatprep.subr.mxu0 %v109
    %141 = vmatpush1.msra.mxu0 %v108
    %142 = vmatprep.subr.mxu0 0.0
    %143 = vmatpush1.msra.mxu0 0.0
    %144 = vmatprep.subr.mxu0 0.0
    %145 = vmatpush1.msra.mxu0 0.0
    %146 = vmatprep.subr.mxu0 0.0
    %147 = vmatpush1.msra.mxu0 0.0
    %148 = vmatprep.subr.mxu0 0.0
    %149 = vmatpush1.msra.mxu0 0.0
    %150 = vmatprep.subr.mxu0 0.0
    %151 = vmatpush1.msra.mxu0 0.0
    %152 = vmatprep.subr.mxu0 0.0
    %153 = vmatpush1.msra.mxu0 0.0
    %154 = vmatprep.subr.mxu0 0.0
    %155 = vmatpush1.msra.mxu0 0.0
    %156 = vmatprep.subr.mxu0 0.0
    %157 = vmatpush1.msra.mxu0 0.0
    %158 = vmatprep.subr.mxu0 0.0
    %159 = vmatpush1.msra.mxu0 0.0
    %160 = vmatprep.subr.mxu0 0.0
    %161 = vmatpush1.msra.mxu0 0.0
    %162 = vmatprep.subr.mxu0 0.0
    %163 = vmatpush1.msra.mxu0 0.0
    %164 = vmatprep.subr.mxu0 0.0
    %165 = vmatpush1.msra.mxu0 0.0
    %166 = vmatprep.subr.mxu0 0.0
    %167 = vmatpush1.msra.mxu0 0.0
    %168 = vmatprep.subr.mxu0 0.0
    %169 = vmatpush1.msra.mxu0 0.0
    %170 = vmatprep.subr.mxu0 0.0
    %171 = vmatpush1.msra.mxu0 0.0
    %172 = vmatprep.subr.mxu0 0.0
    %173 = vmatpush1.msra.mxu0 0.0
    %174 = vmatprep.mubr.f32.mxu0 0.0
    %175 = vmatmul.mubr.f32.gmra.mrb[0].mxu0 %v74
    %v176 = vpop.f32.mrb[0].mxu0
    %v177 = vadd.f32 0.0, %v176
    %v178 = vpop.f32.mrb[0].mxu0
    %v179 = vadd.f32 0.0, %v178
    %180 = vdwg.mxu0
    %v181 = vld [vmem:[#allocation6 + $0x10] sm:$0xff]
    %v182 = vld [vmem:[#allocation6 + $0x28] sm:$0xff]
    %v183 = vld [vmem:[#allocation6 + $0x40] sm:$0xff]
    %v184 = vld [vmem:[#allocation6 + $0x58] sm:$0xff]
    %v185 = vld [vmem:[#allocation6 + $0x70] sm:$0xff]
    %v186 = vld [vmem:[#allocation6 + $0x88] sm:$0xff]
    %v187 = vld [vmem:[#allocation6 + $0xa0] sm:$0xff]
    %v188 = vld [vmem:[#allocation6 + $0xb8] sm:$0xff]
    %v189 = vld [vmem:[#allocation6 + $0xd0] sm:$0xff]
    %v190 = vld [vmem:[#allocation6 + $0xe8] sm:$0xff]
    %v191 = vld [vmem:[#allocation6 + $0x100] sm:$0xff]
    %v192 = vld [vmem:[#allocation6 + $0x118] sm:$0xff]
    %v193 = vld [vmem:[#allocation6 + $0x130] sm:$0xff]
    %v194 = vld [vmem:[#allocation6 + $0x148] sm:$0xff]
    %v195 = vld [vmem:[#allocation6 + $0x160] sm:$0xff]
    %v196 = vld [vmem:[#allocation6 + $0x178] sm:$0xff]
    %v197 = vadd.f32 %v75, %v177
    %v198 = vxor.u32 %v197, 2147483648
    %v199 = vmul.f32 %v198, 1.442695
    %v200 = vpow.pop %v199
    %v201 = vadd.f32 %v200, 1.0
    %v202 = vrcp.pop %v201
    %v203 = vmul.f32 1.0, %v202
    %v204 = vadd.f32 %v76, %v179
    %v205 = vxor.u32 %v204, 2147483648
    %v206 = vmul.f32 %v205, 1.442695
    %v207 = vpow.pop %v206
    %v208 = vadd.f32 %v207, 1.0
    %v209 = vrcp.pop %v208
    %v210 = vmul.f32 1.0, %v209
    %211 = vmatprep.subr.mxu0 0.0
    %212 = vmatpush1.msra.mxu0 %v181
    %213 = vmatprep.subr.mxu0 0.0
    %214 = vmatpush1.msra.mxu0 %v182
    %215 = vmatprep.subr.mxu0 0.0
    %216 = vmatpush1.msra.mxu0 %v183
    %217 = vmatprep.subr.mxu0 0.0
    %218 = vmatpush1.msra.mxu0 %v184
    %219 = vmatprep.subr.mxu0 0.0
    %220 = vmatpush1.msra.mxu0 %v185
    %221 = vmatprep.subr.mxu0 0.0
    %222 = vmatpush1.msra.mxu0 %v186
    %223 = vmatprep.subr.mxu0 0.0
    %224 = vmatpush1.msra.mxu0 %v187
    %225 = vmatprep.subr.mxu0 0.0
    %226 = vmatpush1.msra.mxu0 %v188
    %227 = vmatprep.subr.mxu0 0.0
    %228 = vmatpush1.msra.mxu0 %v189
    %229 = vmatprep.subr.mxu0 0.0
    %230 = vmatpush1.msra.mxu0 %v190
    %231 = vmatprep.subr.mxu0 0.0
    %232 = vmatpush1.msra.mxu0 %v191
    %233 = vmatprep.subr.mxu0 0.0
    %234 = vmatpush1.msra.mxu0 %v192
    %235 = vmatprep.subr.mxu0 0.0
    %236 = vmatpush1.msra.mxu0 %v193
    %237 = vmatprep.subr.mxu0 0.0
    %238 = vmatpush1.msra.mxu0 %v194
    %239 = vmatprep.subr.mxu0 0.0
    %240 = vmatpush1.msra.mxu0 %v195
    %241 = vmatprep.subr.mxu0 0.0
    %242 = vmatpush1.msra.mxu0 %v196
    %243 = vmatprep.subr.mxu0 0.0
    %244 = vmatpush1.msra.mxu0 0.0
    %245 = vmatprep.subr.mxu0 0.0
    %246 = vmatpush1.msra.mxu0 0.0
    %247 = vmatprep.subr.mxu0 0.0
    %248 = vmatpush1.msra.mxu0 0.0
    %249 = vmatprep.subr.mxu0 0.0
    %250 = vmatpush1.msra.mxu0 0.0
    %251 = vmatprep.subr.mxu0 0.0
    %252 = vmatpush1.msra.mxu0 0.0
    %253 = vmatprep.subr.mxu0 0.0
    %254 = vmatpush1.msra.mxu0 0.0
    %255 = vmatprep.subr.mxu0 0.0
    %256 = vmatpush1.msra.mxu0 0.0
    %257 = vmatprep.subr.mxu0 0.0
    %258 = vmatpush1.msra.mxu0 0.0
    %259 = vmatprep.subr.mxu0 0.0
    %260 = vmatpush1.msra.mxu0 0.0
    %261 = vmatprep.subr.mxu0 0.0
    %262 = vmatpush1.msra.mxu0 0.0
    %263 = vmatprep.subr.mxu0 0.0
    %264 = vmatpush1.msra.mxu0 0.0
    %265 = vmatprep.subr.mxu0 0.0
    %266 = vmatpush1.msra.mxu0 0.0
    %267 = vmatprep.subr.mxu0 0.0
    %268 = vmatpush1.msra.mxu0 0.0
    %269 = vmatprep.subr.mxu0 0.0
    %270 = vmatpush1.msra.mxu0 0.0
    %271 = vmatprep.subr.mxu0 0.0
    %272 = vmatpush1.msra.mxu0 0.0
    %273 = vmatprep.subr.mxu0 0.0
    %274 = vmatpush1.msra.mxu0 0.0
    %275 = vmatprep.mubr.f32.mxu0 0.0
    %276 = vmatmul.mubr.f32.gmra.mrb[0].mxu0 %v74
    %v277 = vpop.f32.mrb[0].mxu0
    %v278 = vadd.f32 %v72, %v277
    %v279 = vpop.f32.mrb[0].mxu0
    %280 = vdwg.mxu0
    %v281 = vmul.f32 %v203, %v278
    %v282 = vadd.f32 %v77, %v281
    %v283 = vtanh.pop %v282
    %v284 = vsub.f32 %v74, %v283
    %v285 = vmul.f32 %v210, %v284
    %v286 = vadd.f32 %v283, %v285
    %s287 = scalar_lea.vmem [#allocation3], 24
    %v288 = vld [vmem:[%s287] sm:$0xff]
    %v289 = vld [vmem:[%s287 + $0x8] sm:$0xff]
    %v290 = vld [vmem:[%s287 + $0x10] sm:$0xff]
    %291 = vmatprep.subr.mxu0 %v79
    %292 = vmatpush1.msra.mxu0 %v78
    %293 = vmatprep.subr.mxu0 %v81
    %294 = vmatpush1.msra.mxu0 %v80
    %295 = vmatprep.subr.mxu0 %v83
    %296 = vmatpush1.msra.mxu0 %v82
    %297 = vmatprep.subr.mxu0 %v85
    %298 = vmatpush1.msra.mxu0 %v84
    %299 = vmatprep.subr.mxu0 %v87
    %300 = vmatpush1.msra.mxu0 %v86
    %301 = vmatprep.subr.mxu0 %v89
    %302 = vmatpush1.msra.mxu0 %v88
    %303 = vmatprep.subr.mxu0 %v91
    %304 = vmatpush1.msra.mxu0 %v90
    %305 = vmatprep.subr.mxu0 %v93
    %306 = vmatpush1.msra.mxu0 %v92
    %307 = vmatprep.subr.mxu0 %v95
    %308 = vmatpush1.msra.mxu0 %v94
    %309 = vmatprep.subr.mxu0 %v97
    %310 = vmatpush1.msra.mxu0 %v96
    %311 = vmatprep.subr.mxu0 %v99
    %312 = vmatpush1.msra.mxu0 %v98
    %313 = vmatprep.subr.mxu0 %v101
    %314 = vmatpush1.msra.mxu0 %v100
    %315 = vmatprep.subr.mxu0 %v103
    %316 = vmatpush1.msra.mxu0 %v102
    %317 = vmatprep.subr.mxu0 %v105
    %318 = vmatpush1.msra.mxu0 %v104
    %319 = vmatprep.subr.mxu0 %v107
    %320 = vmatpush1.msra.mxu0 %v106
    %321 = vmatprep.subr.mxu0 %v109
    %322 = vmatpush1.msra.mxu0 %v108
    %323 = vmatprep.subr.mxu0 0.0
    %324 = vmatpush1.msra.mxu0 0.0
    %325 = vmatprep.subr.mxu0 0.0
    %326 = vmatpush1.msra.mxu0 0.0
    %327 = vmatprep.subr.mxu0 0.0
    %328 = vmatpush1.msra.mxu0 0.0
    %329 = vmatprep.subr.mxu0 0.0
    %330 = vmatpush1.msra.mxu0 0.0
    %331 = vmatprep.subr.mxu0 0.0
    %332 = vmatpush1.msra.mxu0 0.0
    %333 = vmatprep.subr.mxu0 0.0
    %334 = vmatpush1.msra.mxu0 0.0
    %335 = vmatprep.subr.mxu0 0.0
    %336 = vmatpush1.msra.mxu0 0.0
    %337 = vmatprep.subr.mxu0 0.0
    %338 = vmatpush1.msra.mxu0 0.0
    %339 = vmatprep.subr.mxu0 0.0
    %340 = vmatpush1.msra.mxu0 0.0
    %341 = vmatprep.subr.mxu0 0.0
    %342 = vmatpush1.msra.mxu0 0.0
    %343 = vmatprep.subr.mxu0 0.0
    %344 = vmatpush1.msra.mxu0 0.0
    %345 = vmatprep.subr.mxu0 0.0
    %346 = vmatpush1.msra.mxu0 0.0
    %347 = vmatprep.subr.mxu0 0.0
    %348 = vmatpush1.msra.mxu0 0.0
    %349 = vmatprep.subr.mxu0 0.0
    %350 = vmatpush1.msra.mxu0 0.0
    %351 = vmatprep.subr.mxu0 0.0
    %352 = vmatpush1.msra.mxu0 0.0
    %353 = vmatprep.subr.mxu0 0.0
    %354 = vmatpush1.msra.mxu0 0.0
    %355 = vmatprep.mubr.f32.mxu0 0.0
    %356 = vmatmul.mubr.f32.gmra.mrb[0].mxu0 %v286
    %v357 = vpop.f32.mrb[0].mxu0
    %v358 = vadd.f32 0.0, %v357
    %v359 = vpop.f32.mrb[0].mxu0
    %v360 = vadd.f32 0.0, %v359
    %361 = vdwg.mxu0
    %v362 = vadd.f32 %v288, %v358
    %v363 = vxor.u32 %v362, 2147483648
    %v364 = vmul.f32 %v363, 1.442695
    %v365 = vpow.pop %v364
    %v366 = vadd.f32 %v365, 1.0
    %v367 = vrcp.pop %v366
    %v368 = vmul.f32 1.0, %v367
    %v369 = vadd.f32 %v289, %v360
    %v370 = vxor.u32 %v369, 2147483648
    %v371 = vmul.f32 %v370, 1.442695
    %v372 = vpow.pop %v371
    %v373 = vadd.f32 %v372, 1.0
    %v374 = vrcp.pop %v373
    %v375 = vmul.f32 1.0, %v374
    %376 = vmatprep.subr.mxu0 0.0
    %377 = vmatpush1.msra.mxu0 %v181
    %378 = vmatprep.subr.mxu0 0.0
    %379 = vmatpush1.msra.mxu0 %v182
    %380 = vmatprep.subr.mxu0 0.0
    %381 = vmatpush1.msra.mxu0 %v183
    %382 = vmatprep.subr.mxu0 0.0
    %383 = vmatpush1.msra.mxu0 %v184
    %384 = vmatprep.subr.mxu0 0.0
    %385 = vmatpush1.msra.mxu0 %v185
    %386 = vmatprep.subr.mxu0 0.0
    %387 = vmatpush1.msra.mxu0 %v186
    %388 = vmatprep.subr.mxu0 0.0
    %389 = vmatpush1.msra.mxu0 %v187
    %390 = vmatprep.subr.mxu0 0.0
    %391 = vmatpush1.msra.mxu0 %v188
    %392 = vmatprep.subr.mxu0 0.0
    %393 = vmatpush1.msra.mxu0 %v189
    %394 = vmatprep.subr.mxu0 0.0
    %395 = vmatpush1.msra.mxu0 %v190
    %396 = vmatprep.subr.mxu0 0.0
    %397 = vmatpush1.msra.mxu0 %v191
    %398 = vmatprep.subr.mxu0 0.0
    %399 = vmatpush1.msra.mxu0 %v192
    %400 = vmatprep.subr.mxu0 0.0
    %401 = vmatpush1.msra.mxu0 %v193
    %402 = vmatprep.subr.mxu0 0.0
    %403 = vmatpush1.msra.mxu0 %v194
    %404 = vmatprep.subr.mxu0 0.0
    %405 = vmatpush1.msra.mxu0 %v195
    %406 = vmatprep.subr.mxu0 0.0
    %407 = vmatpush1.msra.mxu0 %v196
    %408 = vmatprep.subr.mxu0 0.0
    %409 = vmatpush1.msra.mxu0 0.0
    %410 = vmatprep.subr.mxu0 0.0
    %411 = vmatpush1.msra.mxu0 0.0
    %412 = vmatprep.subr.mxu0 0.0
    %413 = vmatpush1.msra.mxu0 0.0
    %414 = vmatprep.subr.mxu0 0.0
    %415 = vmatpush1.msra.mxu0 0.0
    %416 = vmatprep.subr.mxu0 0.0
    %417 = vmatpush1.msra.mxu0 0.0
    %418 = vmatprep.subr.mxu0 0.0
    %419 = vmatpush1.msra.mxu0 0.0
    %420 = vmatprep.subr.mxu0 0.0
    %421 = vmatpush1.msra.mxu0 0.0
    %422 = vmatprep.subr.mxu0 0.0
    %423 = vmatpush1.msra.mxu0 0.0
    %424 = vmatprep.subr.mxu0 0.0
    %425 = vmatpush1.msra.mxu0 0.0
    %426 = vmatprep.subr.mxu0 0.0
    %427 = vmatpush1.msra.mxu0 0.0
    %428 = vmatprep.subr.mxu0 0.0
    %429 = vmatpush1.msra.mxu0 0.0
    %430 = vmatprep.subr.mxu0 0.0
    %431 = vmatpush1.msra.mxu0 0.0
    %432 = vmatprep.subr.mxu0 0.0
    %433 = vmatpush1.msra.mxu0 0.0
    %434 = vmatprep.subr.mxu0 0.0
    %435 = vmatpush1.msra.mxu0 0.0
    %436 = vmatprep.subr.mxu0 0.0
    %437 = vmatpush1.msra.mxu0 0.0
    %438 = vmatprep.subr.mxu0 0.0
    %439 = vmatpush1.msra.mxu0 0.0
    %440 = vmatprep.mubr.f32.mxu0 0.0
    %441 = vmatmul.mubr.f32.gmra.mrb[0].mxu0 %v286
    %v442 = vpop.f32.mrb[0].mxu0
    %v443 = vadd.f32 %v72, %v442
    %v444 = vpop.f32.mrb[0].mxu0
    %445 = vdwg.mxu0
    %v446 = vmul.f32 %v368, %v443
    %v447 = vadd.f32 %v290, %v446
    %v448 = vtanh.pop %v447
    %v449 = vsub.f32 %v286, %v448
    %v450 = vmul.f32 %v375, %v449
    %v451 = vadd.f32 %v448, %v450
    %s452 = scalar_lea.vmem [#allocation3], 48
    %v453 = vld [vmem:[%s452] sm:$0xff]
    %v454 = vld [vmem:[%s452 + $0x8] sm:$0xff]
    %v455 = vld [vmem:[%s452 + $0x10] sm:$0xff]
    %456 = vmatprep.subr.mxu0 %v79
    %457 = vmatpush1.msra.mxu0 %v78
    %458 = vmatprep.subr.mxu0 %v81
    %459 = vmatpush1.msra.mxu0 %v80
    %460 = vmatprep.subr.mxu0 %v83
    %461 = vmatpush1.msra.mxu0 %v82
    %462 = vmatprep.subr.mxu0 %v85
    %463 = vmatpush1.msra.mxu0 %v84
    %464 = vmatprep.subr.mxu0 %v87
    %465 = vmatpush1.msra.mxu0 %v86
    %466 = vmatprep.subr.mxu0 %v89
    %467 = vmatpush1.msra.mxu0 %v88
    %468 = vmatprep.subr.mxu0 %v91
    %469 = vmatpush1.msra.mxu0 %v90
    %470 = vmatprep.subr.mxu0 %v93
    %471 = vmatpush1.msra.mxu0 %v92
    %472 = vmatprep.subr.mxu0 %v95
    %473 = vmatpush1.msra.mxu0 %v94
    %474 = vmatprep.subr.mxu0 %v97
    %475 = vmatpush1.msra.mxu0 %v96
    %476 = vmatprep.subr.mxu0 %v99
    %477 = vmatpush1.msra.mxu0 %v98
    %478 = vmatprep.subr.mxu0 %v101
    %479 = vmatpush1.msra.mxu0 %v100
    %480 = vmatprep.subr.mxu0 %v103
    %481 = vmatpush1.msra.mxu0 %v102
    %482 = vmatprep.subr.mxu0 %v105
    %483 = vmatpush1.msra.mxu0 %v104
    %484 = vmatprep.subr.mxu0 %v107
    %485 = vmatpush1.msra.mxu0 %v106
    %486 = vmatprep.subr.mxu0 %v109
    %487 = vmatpush1.msra.mxu0 %v108
    %488 = vmatprep.subr.mxu0 0.0
    %489 = vmatpush1.msra.mxu0 0.0
    %490 = vmatprep.subr.mxu0 0.0
    %491 = vmatpush1.msra.mxu0 0.0
    %492 = vmatprep.subr.mxu0 0.0
    %493 = vmatpush1.msra.mxu0 0.0
    %494 = vmatprep.subr.mxu0 0.0
    %495 = vmatpush1.msra.mxu0 0.0
    %496 = vmatprep.subr.mxu0 0.0
    %497 = vmatpush1.msra.mxu0 0.0
    %498 = vmatprep.subr.mxu0 0.0
    %499 = vmatpush1.msra.mxu0 0.0
    %500 = vmatprep.subr.mxu0 0.0
    %501 = vmatpush1.msra.mxu0 0.0
    %502 = vmatprep.subr.mxu0 0.0
    %503 = vmatpush1.msra.mxu0 0.0
    %504 = vmatprep.subr.mxu0 0.0
    %505 = vmatpush1.msra.mxu0 0.0
    %506 = vmatprep.subr.mxu0 0.0
    %507 = vmatpush1.msra.mxu0 0.0
    %508 = vmatprep.subr.mxu0 0.0
    %509 = vmatpush1.msra.mxu0 0.0
    %510 = vmatprep.subr.mxu0 0.0
    %511 = vmatpush1.msra.mxu0 0.0
    %512 = vmatprep.subr.mxu0 0.0
    %513 = vmatpush1.msra.mxu0 0.0
    %514 = vmatprep.subr.mxu0 0.0
    %515 = vmatpush1.msra.mxu0 0.0
    %516 = vmatprep.subr.mxu0 0.0
    %517 = vmatpush1.msra.mxu0 0.0
    %518 = vmatprep.subr.mxu0 0.0
    %519 = vmatpush1.msra.mxu0 0.0
    %520 = vmatprep.mubr.f32.mxu0 0.0
    %521 = vmatmul.mubr.f32.gmra.mrb[0].mxu0 %v451
    %v522 = vpop.f32.mrb[0].mxu0
    %v523 = vadd.f32 0.0, %v522
    %v524 = vpop.f32.mrb[0].mxu0
    %v525 = vadd.f32 0.0, %v524
    %526 = vdwg.mxu0
    %v527 = vadd.f32 %v453, %v523
    %v528 = vxor.u32 %v527, 2147483648
    %v529 = vmul.f32 %v528, 1.442695
    %v530 = vpow.pop %v529
    %v531 = vadd.f32 %v530, 1.0
    %v532 = vrcp.pop %v531
    %v533 = vmul.f32 1.0, %v532
    %v534 = vadd.f32 %v454, %v525
    %v535 = vxor.u32 %v534, 2147483648
    %v536 = vmul.f32 %v535, 1.442695
    %v537 = vpow.pop %v536
    %v538 = vadd.f32 %v537, 1.0
    %v539 = vrcp.pop %v538
    %v540 = vmul.f32 1.0, %v539
    %541 = vmatprep.subr.mxu0 0.0
    %542 = vmatpush1.msra.mxu0 %v181
    %543 = vmatprep.subr.mxu0 0.0
    %544 = vmatpush1.msra.mxu0 %v182
    %545 = vmatprep.subr.mxu0 0.0
    %546 = vmatpush1.msra.mxu0 %v183
    %547 = vmatprep.subr.mxu0 0.0
    %548 = vmatpush1.msra.mxu0 %v184
    %549 = vmatprep.subr.mxu0 0.0
    %550 = vmatpush1.msra.mxu0 %v185
    %551 = vmatprep.subr.mxu0 0.0
    %552 = vmatpush1.msra.mxu0 %v186
    %553 = vmatprep.subr.mxu0 0.0
    %554 = vmatpush1.msra.mxu0 %v187
    %555 = vmatprep.subr.mxu0 0.0
    %556 = vmatpush1.msra.mxu0 %v188
    %557 = vmatprep.subr.mxu0 0.0
    %558 = vmatpush1.msra.mxu0 %v189
    %559 = vmatprep.subr.mxu0 0.0
    %560 = vmatpush1.msra.mxu0 %v190
    %561 = vmatprep.subr.mxu0 0.0
    %562 = vmatpush1.msra.mxu0 %v191
    %563 = vmatprep.subr.mxu0 0.0
    %564 = vmatpush1.msra.mxu0 %v192
    %565 = vmatprep.subr.mxu0 0.0
    %566 = vmatpush1.msra.mxu0 %v193
    %567 = vmatprep.subr.mxu0 0.0
    %568 = vmatpush1.msra.mxu0 %v194
    %569 = vmatprep.subr.mxu0 0.0
    %570 = vmatpush1.msra.mxu0 %v195
    %571 = vmatprep.subr.mxu0 0.0
    %572 = vmatpush1.msra.mxu0 %v196
    %573 = vmatprep.subr.mxu0 0.0
    %574 = vmatpush1.msra.mxu0 0.0
    %575 = vmatprep.subr.mxu0 0.0
    %576 = vmatpush1.msra.mxu0 0.0
    %577 = vmatprep.subr.mxu0 0.0
    %578 = vmatpush1.msra.mxu0 0.0
    %579 = vmatprep.subr.mxu0 0.0
    %580 = vmatpush1.msra.mxu0 0.0
    %581 = vmatprep.subr.mxu0 0.0
    %582 = vmatpush1.msra.mxu0 0.0
    %583 = vmatprep.subr.mxu0 0.0
    %584 = vmatpush1.msra.mxu0 0.0
    %585 = vmatprep.subr.mxu0 0.0
    %586 = vmatpush1.msra.mxu0 0.0
    %587 = vmatprep.subr.mxu0 0.0
    %588 = vmatpush1.msra.mxu0 0.0
    %589 = vmatprep.subr.mxu0 0.0
    %590 = vmatpush1.msra.mxu0 0.0
    %591 = vmatprep.subr.mxu0 0.0
    %592 = vmatpush1.msra.mxu0 0.0
    %593 = vmatprep.subr.mxu0 0.0
    %594 = vmatpush1.msra.mxu0 0.0
    %595 = vmatprep.subr.mxu0 0.0
    %596 = vmatpush1.msra.mxu0 0.0
    %597 = vmatprep.subr.mxu0 0.0
    %598 = vmatpush1.msra.mxu0 0.0
    %599 = vmatprep.subr.mxu0 0.0
    %600 = vmatpush1.msra.mxu0 0.0
    %601 = vmatprep.subr.mxu0 0.0
    %602 = vmatpush1.msra.mxu0 0.0
    %603 = vmatprep.subr.mxu0 0.0
    %604 = vmatpush1.msra.mxu0 0.0
    %605 = vmatprep.mubr.f32.mxu0 0.0
    %606 = vmatmul.mubr.f32.gmra.mrb[0].mxu0 %v451
    %v607 = vpop.f32.mrb[0].mxu0
    %v608 = vadd.f32 %v72, %v607
    %v609 = vpop.f32.mrb[0].mxu0
    %610 = vdwg.mxu0
    %v611 = vmul.f32 %v533, %v608
    %v612 = vadd.f32 %v455, %v611
    %v613 = vtanh.pop %v612
    %v614 = vsub.f32 %v451, %v613
    %v615 = vmul.f32 %v540, %v614
    %v616 = vadd.f32 %v613, %v615
    %s617 = scalar_lea.vmem [#allocation3], 72
    %v618 = vld [vmem:[%s617] sm:$0xff]
    %v619 = vld [vmem:[%s617 + $0x8] sm:$0xff]
    %v620 = vld [vmem:[%s617 + $0x10] sm:$0xff]
    %621 = vmatprep.subr.mxu0 %v79
    %622 = vmatpush1.msra.mxu0 %v78
    %623 = vmatprep.subr.mxu0 %v81
    %624 = vmatpush1.msra.mxu0 %v80
    %625 = vmatprep.subr.mxu0 %v83
    %626 = vmatpush1.msra.mxu0 %v82
    %627 = vmatprep.subr.mxu0 %v85
    %628 = vmatpush1.msra.mxu0 %v84
    %629 = vmatprep.subr.mxu0 %v87
    %630 = vmatpush1.msra.mxu0 %v86
    %631 = vmatprep.subr.mxu0 %v89
    %632 = vmatpush1.msra.mxu0 %v88
    %633 = vmatprep.subr.mxu0 %v91
    %634 = vmatpush1.msra.mxu0 %v90
    %635 = vmatprep.subr.mxu0 %v93
    %636 = vmatpush1.msra.mxu0 %v92
    %637 = vmatprep.subr.mxu0 %v95
    %638 = vmatpush1.msra.mxu0 %v94
    %639 = vmatprep.subr.mxu0 %v97
    %640 = vmatpush1.msra.mxu0 %v96
    %641 = vmatprep.subr.mxu0 %v99
    %642 = vmatpush1.msra.mxu0 %v98
    %643 = vmatprep.subr.mxu0 %v101
    %644 = vmatpush1.msra.mxu0 %v100
    %645 = vmatprep.subr.mxu0 %v103
    %646 = vmatpush1.msra.mxu0 %v102
    %647 = vmatprep.subr.mxu0 %v105
    %648 = vmatpush1.msra.mxu0 %v104
    %649 = vmatprep.subr.mxu0 %v107
    %650 = vmatpush1.msra.mxu0 %v106
    %651 = vmatprep.subr.mxu0 %v109
    %652 = vmatpush1.msra.mxu0 %v108
    %653 = vmatprep.subr.mxu0 0.0
    %654 = vmatpush1.msra.mxu0 0.0
    %655 = vmatprep.subr.mxu0 0.0
    %656 = vmatpush1.msra.mxu0 0.0
    %657 = vmatprep.subr.mxu0 0.0
    %658 = vmatpush1.msra.mxu0 0.0
    %659 = vmatprep.subr.mxu0 0.0
    %660 = vmatpush1.msra.mxu0 0.0
    %661 = vmatprep.subr.mxu0 0.0
    %662 = vmatpush1.msra.mxu0 0.0
    %663 = vmatprep.subr.mxu0 0.0
    %664 = vmatpush1.msra.mxu0 0.0
    %665 = vmatprep.subr.mxu0 0.0
    %666 = vmatpush1.msra.mxu0 0.0
    %667 = vmatprep.subr.mxu0 0.0
    %668 = vmatpush1.msra.mxu0 0.0
    %669 = vmatprep.subr.mxu0 0.0
    %670 = vmatpush1.msra.mxu0 0.0
    %671 = vmatprep.subr.mxu0 0.0
    %672 = vmatpush1.msra.mxu0 0.0
    %673 = vmatprep.subr.mxu0 0.0
    %674 = vmatpush1.msra.mxu0 0.0
    %675 = vmatprep.subr.mxu0 0.0
    %676 = vmatpush1.msra.mxu0 0.0
    %677 = vmatprep.subr.mxu0 0.0
    %678 = vmatpush1.msra.mxu0 0.0
    %679 = vmatprep.subr.mxu0 0.0
    %680 = vmatpush1.msra.mxu0 0.0
    %681 = vmatprep.subr.mxu0 0.0
    %682 = vmatpush1.msra.mxu0 0.0
    %683 = vmatprep.subr.mxu0 0.0
    %684 = vmatpush1.msra.mxu0 0.0
    %685 = vmatprep.mubr.f32.mxu0 0.0
    %686 = vmatmul.mubr.f32.gmra.mrb[0].mxu0 %v616
    %v687 = vpop.f32.mrb[0].mxu0
    %v688 = vadd.f32 0.0, %v687
    %v689 = vpop.f32.mrb[0].mxu0
    %v690 = vadd.f32 0.0, %v689
    %691 = vdwg.mxu0
    %v692 = vadd.f32 %v618, %v688
    %v693 = vxor.u32 %v692, 2147483648
    %v694 = vmul.f32 %v693, 1.442695
    %v695 = vpow.pop %v694
    %v696 = vadd.f32 %v695, 1.0
    %v697 = vrcp.pop %v696
    %v698 = vmul.f32 1.0, %v697
    %v699 = vadd.f32 %v619, %v690
    %v700 = vxor.u32 %v699, 2147483648
    %v701 = vmul.f32 %v700, 1.442695
    %v702 = vpow.pop %v701
    %v703 = vadd.f32 %v702, 1.0
    %v704 = vrcp.pop %v703
    %v705 = vmul.f32 1.0, %v704
    %706 = vmatprep.subr.mxu0 0.0
    %707 = vmatpush1.msra.mxu0 %v181
    %708 = vmatprep.subr.mxu0 0.0
    %709 = vmatpush1.msra.mxu0 %v182
    %710 = vmatprep.subr.mxu0 0.0
    %711 = vmatpush1.msra.mxu0 %v183
    %712 = vmatprep.subr.mxu0 0.0
    %713 = vmatpush1.msra.mxu0 %v184
    %714 = vmatprep.subr.mxu0 0.0
    %715 = vmatpush1.msra.mxu0 %v185
    %716 = vmatprep.subr.mxu0 0.0
    %717 = vmatpush1.msra.mxu0 %v186
    %718 = vmatprep.subr.mxu0 0.0
    %719 = vmatpush1.msra.mxu0 %v187
    %720 = vmatprep.subr.mxu0 0.0
    %721 = vmatpush1.msra.mxu0 %v188
    %722 = vmatprep.subr.mxu0 0.0
    %723 = vmatpush1.msra.mxu0 %v189
    %724 = vmatprep.subr.mxu0 0.0
    %725 = vmatpush1.msra.mxu0 %v190
    %726 = vmatprep.subr.mxu0 0.0
    %727 = vmatpush1.msra.mxu0 %v191
    %728 = vmatprep.subr.mxu0 0.0
    %729 = vmatpush1.msra.mxu0 %v192
    %730 = vmatprep.subr.mxu0 0.0
    %731 = vmatpush1.msra.mxu0 %v193
    %732 = vmatprep.subr.mxu0 0.0
    %733 = vmatpush1.msra.mxu0 %v194
    %734 = vmatprep.subr.mxu0 0.0
    %735 = vmatpush1.msra.mxu0 %v195
    %736 = vmatprep.subr.mxu0 0.0
    %737 = vmatpush1.msra.mxu0 %v196
    %738 = vmatprep.subr.mxu0 0.0
    %739 = vmatpush1.msra.mxu0 0.0
    %740 = vmatprep.subr.mxu0 0.0
    %741 = vmatpush1.msra.mxu0 0.0
    %742 = vmatprep.subr.mxu0 0.0
    %743 = vmatpush1.msra.mxu0 0.0
    %744 = vmatprep.subr.mxu0 0.0
    %745 = vmatpush1.msra.mxu0 0.0
    %746 = vmatprep.subr.mxu0 0.0
    %747 = vmatpush1.msra.mxu0 0.0
    %748 = vmatprep.subr.mxu0 0.0
    %749 = vmatpush1.msra.mxu0 0.0
    %750 = vmatprep.subr.mxu0 0.0
    %751 = vmatpush1.msra.mxu0 0.0
    %752 = vmatprep.subr.mxu0 0.0
    %753 = vmatpush1.msra.mxu0 0.0
    %754 = vmatprep.subr.mxu0 0.0
    %755 = vmatpush1.msra.mxu0 0.0
    %756 = vmatprep.subr.mxu0 0.0
    %757 = vmatpush1.msra.mxu0 0.0
    %758 = vmatprep.subr.mxu0 0.0
    %759 = vmatpush1.msra.mxu0 0.0
    %760 = vmatprep.subr.mxu0 0.0
    %761 = vmatpush1.msra.mxu0 0.0
    %762 = vmatprep.subr.mxu0 0.0
    %763 = vmatpush1.msra.mxu0 0.0
    %764 = vmatprep.subr.mxu0 0.0
    %765 = vmatpush1.msra.mxu0 0.0
    %766 = vmatprep.subr.mxu0 0.0
    %767 = vmatpush1.msra.mxu0 0.0
    %768 = vmatprep.subr.mxu0 0.0
    %769 = vmatpush1.msra.mxu0 0.0
    %770 = vmatprep.mubr.f32.mxu0 0.0
    %771 = vmatmul.mubr.f32.gmra.mrb[0].mxu0 %v616
    %v772 = vpop.f32.mrb[0].mxu0
    %v773 = vadd.f32 %v72, %v772
    %v774 = vpop.f32.mrb[0].mxu0
    %775 = vdwg.mxu0
    %v776 = vmul.f32 %v698, %v773
    %v777 = vadd.f32 %v620, %v776
    %v778 = vtanh.pop %v777
    %v779 = vsub.f32 %v616, %v778
    %v780 = vmul.f32 %v705, %v779
    %v781 = vadd.f32 %v778, %v780
    %s782 = scalar_lea.vmem [#allocation3], 96
    %v783 = vld [vmem:[%s782] sm:$0xff]
    %v784 = vld [vmem:[%s782 + $0x8] sm:$0xff]
    %v785 = vld [vmem:[%s782 + $0x10] sm:$0xff]
    %786 = vmatprep.subr.mxu0 %v79
    %787 = vmatpush1.msra.mxu0 %v78
    %788 = vmatprep.subr.mxu0 %v81
    %789 = vmatpush1.msra.mxu0 %v80
    %790 = vmatprep.subr.mxu0 %v83
    %791 = vmatpush1.msra.mxu0 %v82
    %792 = vmatprep.subr.mxu0 %v85
    %793 = vmatpush1.msra.mxu0 %v84
    %794 = vmatprep.subr.mxu0 %v87
    %795 = vmatpush1.msra.mxu0 %v86
    %796 = vmatprep.subr.mxu0 %v89
    %797 = vmatpush1.msra.mxu0 %v88
    %798 = vmatprep.subr.mxu0 %v91
    %799 = vmatpush1.msra.mxu0 %v90
    %800 = vmatprep.subr.mxu0 %v93
    %801 = vmatpush1.msra.mxu0 %v92
    %802 = vmatprep.subr.mxu0 %v95
    %803 = vmatpush1.msra.mxu0 %v94
    %804 = vmatprep.subr.mxu0 %v97
    %805 = vmatpush1.msra.mxu0 %v96
    %806 = vmatprep.subr.mxu0 %v99
    %807 = vmatpush1.msra.mxu0 %v98
    %808 = vmatprep.subr.mxu0 %v101
    %809 = vmatpush1.msra.mxu0 %v100
    %810 = vmatprep.subr.mxu0 %v103
    %811 = vmatpush1.msra.mxu0 %v102
    %812 = vmatprep.subr.mxu0 %v105
    %813 = vmatpush1.msra.mxu0 %v104
    %814 = vmatprep.subr.mxu0 %v107
    %815 = vmatpush1.msra.mxu0 %v106
    %816 = vmatprep.subr.mxu0 %v109
    %817 = vmatpush1.msra.mxu0 %v108
    %818 = vmatprep.subr.mxu0 0.0
    %819 = vmatpush1.msra.mxu0 0.0
    %820 = vmatprep.subr.mxu0 0.0
    %821 = vmatpush1.msra.mxu0 0.0
    %822 = vmatprep.subr.mxu0 0.0
    %823 = vmatpush1.msra.mxu0 0.0
    %824 = vmatprep.subr.mxu0 0.0
    %825 = vmatpush1.msra.mxu0 0.0
    %826 = vmatprep.subr.mxu0 0.0
    %827 = vmatpush1.msra.mxu0 0.0
    %828 = vmatprep.subr.mxu0 0.0
    %829 = vmatpush1.msra.mxu0 0.0
    %830 = vmatprep.subr.mxu0 0.0
    %831 = vmatpush1.msra.mxu0 0.0
    %832 = vmatprep.subr.mxu0 0.0
    %833 = vmatpush1.msra.mxu0 0.0
    %834 = vmatprep.subr.mxu0 0.0
    %835 = vmatpush1.msra.mxu0 0.0
    %836 = vmatprep.subr.mxu0 0.0
    %837 = vmatpush1.msra.mxu0 0.0
    %838 = vmatprep.subr.mxu0 0.0
    %839 = vmatpush1.msra.mxu0 0.0
    %840 = vmatprep.subr.mxu0 0.0
    %841 = vmatpush1.msra.mxu0 0.0
    %842 = vmatprep.subr.mxu0 0.0
    %843 = vmatpush1.msra.mxu0 0.0
    %844 = vmatprep.subr.mxu0 0.0
    %845 = vmatpush1.msra.mxu0 0.0
    %846 = vmatprep.subr.mxu0 0.0
    %847 = vmatpush1.msra.mxu0 0.0
    %848 = vmatprep.subr.mxu0 0.0
    %849 = vmatpush1.msra.mxu0 0.0
    %850 = vmatprep.mubr.f32.mxu0 0.0
    %851 = vmatmul.mubr.f32.gmra.mrb[0].mxu0 %v781
    %v852 = vpop.f32.mrb[0].mxu0
    %v853 = vadd.f32 0.0, %v852
    %v854 = vpop.f32.mrb[0].mxu0
    %v855 = vadd.f32 0.0, %v854
    %856 = vdwg.mxu0
    %v857 = vadd.f32 %v783, %v853
    %v858 = vxor.u32 %v857, 2147483648
    %v859 = vmul.f32 %v858, 1.442695
    %v860 = vpow.pop %v859
    %v861 = vadd.f32 %v860, 1.0
    %v862 = vrcp.pop %v861
    %v863 = vmul.f32 1.0, %v862
    %v864 = vadd.f32 %v784, %v855
    %v865 = vxor.u32 %v864, 2147483648
    %v866 = vmul.f32 %v865, 1.442695
    %v867 = vpow.pop %v866
    %v868 = vadd.f32 %v867, 1.0
    %v869 = vrcp.pop %v868
    %v870 = vmul.f32 1.0, %v869
    %871 = vmatprep.subr.mxu0 0.0
    %872 = vmatpush1.msra.mxu0 %v181
    %873 = vmatprep.subr.mxu0 0.0
    %874 = vmatpush1.msra.mxu0 %v182
    %875 = vmatprep.subr.mxu0 0.0
    %876 = vmatpush1.msra.mxu0 %v183
    %877 = vmatprep.subr.mxu0 0.0
    %878 = vmatpush1.msra.mxu0 %v184
    %879 = vmatprep.subr.mxu0 0.0
    %880 = vmatpush1.msra.mxu0 %v185
    %881 = vmatprep.subr.mxu0 0.0
    %882 = vmatpush1.msra.mxu0 %v186
    %883 = vmatprep.subr.mxu0 0.0
    %884 = vmatpush1.msra.mxu0 %v187
    %885 = vmatprep.subr.mxu0 0.0
    %886 = vmatpush1.msra.mxu0 %v188
    %887 = vmatprep.subr.mxu0 0.0
    %888 = vmatpush1.msra.mxu0 %v189
    %889 = vmatprep.subr.mxu0 0.0
    %890 = vmatpush1.msra.mxu0 %v190
    %891 = vmatprep.subr.mxu0 0.0
    %892 = vmatpush1.msra.mxu0 %v191
    %893 = vmatprep.subr.mxu0 0.0
    %894 = vmatpush1.msra.mxu0 %v192
    %895 = vmatprep.subr.mxu0 0.0
    %896 = vmatpush1.msra.mxu0 %v193
    %897 = vmatprep.subr.mxu0 0.0
    %898 = vmatpush1.msra.mxu0 %v194
    %899 = vmatprep.subr.mxu0 0.0
    %900 = vmatpush1.msra.mxu0 %v195
    %901 = vmatprep.subr.mxu0 0.0
    %902 = vmatpush1.msra.mxu0 %v196
    %903 = vmatprep.subr.mxu0 0.0
    %904 = vmatpush1.msra.mxu0 0.0
    %905 = vmatprep.subr.mxu0 0.0
    %906 = vmatpush1.msra.mxu0 0.0
    %907 = vmatprep.subr.mxu0 0.0
    %908 = vmatpush1.msra.mxu0 0.0
    %909 = vmatprep.subr.mxu0 0.0
    %910 = vmatpush1.msra.mxu0 0.0
    %911 = vmatprep.subr.mxu0 0.0
    %912 = vmatpush1.msra.mxu0 0.0
    %913 = vmatprep.subr.mxu0 0.0
    %914 = vmatpush1.msra.mxu0 0.0
    %915 = vmatprep.subr.mxu0 0.0
    %916 = vmatpush1.msra.mxu0 0.0
    %917 = vmatprep.subr.mxu0 0.0
    %918 = vmatpush1.msra.mxu0 0.0
    %919 = vmatprep.subr.mxu0 0.0
    %920 = vmatpush1.msra.mxu0 0.0
    %921 = vmatprep.subr.mxu0 0.0
    %922 = vmatpush1.msra.mxu0 0.0
    %923 = vmatprep.subr.mxu0 0.0
    %924 = vmatpush1.msra.mxu0 0.0
    %925 = vmatprep.subr.mxu0 0.0
    %926 = vmatpush1.msra.mxu0 0.0
    %927 = vmatprep.subr.mxu0 0.0
    %928 = vmatpush1.msra.mxu0 0.0
    %929 = vmatprep.subr.mxu0 0.0
    %930 = vmatpush1.msra.mxu0 0.0
    %931 = vmatprep.subr.mxu0 0.0
    %932 = vmatpush1.msra.mxu0 0.0
    %933 = vmatprep.subr.mxu0 0.0
    %934 = vmatpush1.msra.mxu0 0.0
    %935 = vmatprep.mubr.f32.mxu0 0.0
    %936 = vmatmul.mubr.f32.gmra.mrb[0].mxu0 %v781
    %v937 = vpop.f32.mrb[0].mxu0
    %v938 = vadd.f32 %v72, %v937
    %v939 = vpop.f32.mrb[0].mxu0
    %940 = vdwg.mxu0
    %v941 = vmul.f32 %v863, %v938
    %v942 = vadd.f32 %v785, %v941
    %v943 = vtanh.pop %v942
    %v944 = vsub.f32 %v781, %v943
    %v945 = vmul.f32 %v870, %v944
    %v946 = vadd.f32 %v943, %v945
    %s947 = scalar_lea.vmem [#allocation3], 120
    %v948 = vld [vmem:[%s947] sm:$0xff]
    %v949 = vld [vmem:[%s947 + $0x8] sm:$0xff]
    %v950 = vld [vmem:[%s947 + $0x10] sm:$0xff]
    %951 = vmatprep.subr.mxu0 %v79
    %952 = vmatpush1.msra.mxu0 %v78
    %953 = vmatprep.subr.mxu0 %v81
    %954 = vmatpush1.msra.mxu0 %v80
    %955 = vmatprep.subr.mxu0 %v83
    %956 = vmatpush1.msra.mxu0 %v82
    %957 = vmatprep.subr.mxu0 %v85
    %958 = vmatpush1.msra.mxu0 %v84
    %959 = vmatprep.subr.mxu0 %v87
    %960 = vmatpush1.msra.mxu0 %v86
    %961 = vmatprep.subr.mxu0 %v89
    %962 = vmatpush1.msra.mxu0 %v88
    %963 = vmatprep.subr.mxu0 %v91
    %964 = vmatpush1.msra.mxu0 %v90
    %965 = vmatprep.subr.mxu0 %v93
    %966 = vmatpush1.msra.mxu0 %v92
    %967 = vmatprep.subr.mxu0 %v95
    %968 = vmatpush1.msra.mxu0 %v94
    %969 = vmatprep.subr.mxu0 %v97
    %970 = vmatpush1.msra.mxu0 %v96
    %971 = vmatprep.subr.mxu0 %v99
    %972 = vmatpush1.msra.mxu0 %v98
    %973 = vmatprep.subr.mxu0 %v101
    %974 = vmatpush1.msra.mxu0 %v100
    %975 = vmatprep.subr.mxu0 %v103
    %976 = vmatpush1.msra.mxu0 %v102
    %977 = vmatprep.subr.mxu0 %v105
    %978 = vmatpush1.msra.mxu0 %v104
    %979 = vmatprep.subr.mxu0 %v107
    %980 = vmatpush1.msra.mxu0 %v106
    %981 = vmatprep.subr.mxu0 %v109
    %982 = vmatpush1.msra.mxu0 %v108
    %983 = vmatprep.subr.mxu0 0.0
    %984 = vmatpush1.msra.mxu0 0.0
    %985 = vmatprep.subr.mxu0 0.0
    %986 = vmatpush1.msra.mxu0 0.0
    %987 = vmatprep.subr.mxu0 0.0
    %988 = vmatpush1.msra.mxu0 0.0
    %989 = vmatprep.subr.mxu0 0.0
    %990 = vmatpush1.msra.mxu0 0.0
    %991 = vmatprep.subr.mxu0 0.0
    %992 = vmatpush1.msra.mxu0 0.0
    %993 = vmatprep.subr.mxu0 0.0
    %994 = vmatpush1.msra.mxu0 0.0
    %995 = vmatprep.subr.mxu0 0.0
    %996 = vmatpush1.msra.mxu0 0.0
    %997 = vmatprep.subr.mxu0 0.0
    %998 = vmatpush1.msra.mxu0 0.0
    %999 = vmatprep.subr.mxu0 0.0
    %1000 = vmatpush1.msra.mxu0 0.0
    %1001 = vmatprep.subr.mxu0 0.0
    %1002 = vmatpush1.msra.mxu0 0.0
    %1003 = vmatprep.subr.mxu0 0.0
    %1004 = vmatpush1.msra.mxu0 0.0
    %1005 = vmatprep.subr.mxu0 0.0
    %1006 = vmatpush1.msra.mxu0 0.0
    %1007 = vmatprep.subr.mxu0 0.0
    %1008 = vmatpush1.msra.mxu0 0.0
    %1009 = vmatprep.subr.mxu0 0.0
    %1010 = vmatpush1.msra.mxu0 0.0
    %1011 = vmatprep.subr.mxu0 0.0
    %1012 = vmatpush1.msra.mxu0 0.0
    %1013 = vmatprep.subr.mxu0 0.0
    %1014 = vmatpush1.msra.mxu0 0.0
    %1015 = vmatprep.mubr.f32.mxu0 0.0
    %1016 = vmatmul.mubr.f32.gmra.mrb[0].mxu0 %v946
    %v1017 = vpop.f32.mrb[0].mxu0
    %v1018 = vadd.f32 0.0, %v1017
    %v1019 = vpop.f32.mrb[0].mxu0
    %v1020 = vadd.f32 0.0, %v1019
    %1021 = vdwg.mxu0
    %v1022 = vadd.f32 %v948, %v1018
    %v1023 = vxor.u32 %v1022, 2147483648
    %v1024 = vmul.f32 %v1023, 1.442695
    %v1025 = vpow.pop %v1024
    %v1026 = vadd.f32 %v1025, 1.0
    %v1027 = vrcp.pop %v1026
    %v1028 = vmul.f32 1.0, %v1027
    %v1029 = vadd.f32 %v949, %v1020
    %v1030 = vxor.u32 %v1029, 2147483648
    %v1031 = vmul.f32 %v1030, 1.442695
    %v1032 = vpow.pop %v1031
    %v1033 = vadd.f32 %v1032, 1.0
    %v1034 = vrcp.pop %v1033
    %v1035 = vmul.f32 1.0, %v1034
    %1036 = vmatprep.subr.mxu0 0.0
    %1037 = vmatpush1.msra.mxu0 %v181
    %1038 = vmatprep.subr.mxu0 0.0
    %1039 = vmatpush1.msra.mxu0 %v182
    %1040 = vmatprep.subr.mxu0 0.0
    %1041 = vmatpush1.msra.mxu0 %v183
    %1042 = vmatprep.subr.mxu0 0.0
    %1043 = vmatpush1.msra.mxu0 %v184
    %1044 = vmatprep.subr.mxu0 0.0
    %1045 = vmatpush1.msra.mxu0 %v185
    %1046 = vmatprep.subr.mxu0 0.0
    %1047 = vmatpush1.msra.mxu0 %v186
    %1048 = vmatprep.subr.mxu0 0.0
    %1049 = vmatpush1.msra.mxu0 %v187
    %1050 = vmatprep.subr.mxu0 0.0
    %1051 = vmatpush1.msra.mxu0 %v188
    %1052 = vmatprep.subr.mxu0 0.0
    %1053 = vmatpush1.msra.mxu0 %v189
    %1054 = vmatprep.subr.mxu0 0.0
    %1055 = vmatpush1.msra.mxu0 %v190
    %1056 = vmatprep.subr.mxu0 0.0
    %1057 = vmatpush1.msra.mxu0 %v191
    %1058 = vmatprep.subr.mxu0 0.0
    %1059 = vmatpush1.msra.mxu0 %v192
    %1060 = vmatprep.subr.mxu0 0.0
    %1061 = vmatpush1.msra.mxu0 %v193
    %1062 = vmatprep.subr.mxu0 0.0
    %1063 = vmatpush1.msra.mxu0 %v194
    %1064 = vmatprep.subr.mxu0 0.0
    %1065 = vmatpush1.msra.mxu0 %v195
    %1066 = vmatprep.subr.mxu0 0.0
    %1067 = vmatpush1.msra.mxu0 %v196
    %1068 = vmatprep.subr.mxu0 0.0
    %1069 = vmatpush1.msra.mxu0 0.0
    %1070 = vmatprep.subr.mxu0 0.0
    %1071 = vmatpush1.msra.mxu0 0.0
    %1072 = vmatprep.subr.mxu0 0.0
    %1073 = vmatpush1.msra.mxu0 0.0
    %1074 = vmatprep.subr.mxu0 0.0
    %1075 = vmatpush1.msra.mxu0 0.0
    %1076 = vmatprep.subr.mxu0 0.0
    %1077 = vmatpush1.msra.mxu0 0.0
    %1078 = vmatprep.subr.mxu0 0.0
    %1079 = vmatpush1.msra.mxu0 0.0
    %1080 = vmatprep.subr.mxu0 0.0
    %1081 = vmatpush1.msra.mxu0 0.0
    %1082 = vmatprep.subr.mxu0 0.0
    %1083 = vmatpush1.msra.mxu0 0.0
    %1084 = vmatprep.subr.mxu0 0.0
    %1085 = vmatpush1.msra.mxu0 0.0
    %1086 = vmatprep.subr.mxu0 0.0
    %1087 = vmatpush1.msra.mxu0 0.0
    %1088 = vmatprep.subr.mxu0 0.0
    %1089 = vmatpush1.msra.mxu0 0.0
    %1090 = vmatprep.subr.mxu0 0.0
    %1091 = vmatpush1.msra.mxu0 0.0
    %1092 = vmatprep.subr.mxu0 0.0
    %1093 = vmatpush1.msra.mxu0 0.0
    %1094 = vmatprep.subr.mxu0 0.0
    %1095 = vmatpush1.msra.mxu0 0.0
    %1096 = vmatprep.subr.mxu0 0.0
    %1097 = vmatpush1.msra.mxu0 0.0
    %1098 = vmatprep.subr.mxu0 0.0
    %1099 = vmatpush1.msra.mxu0 0.0
    %1100 = vmatprep.mubr.f32.mxu0 0.0
    %1101 = vmatmul.mubr.f32.gmra.mrb[0].mxu0 %v946
    %v1102 = vpop.f32.mrb[0].mxu0
    %v1103 = vadd.f32 %v72, %v1102
    %v1104 = vpop.f32.mrb[0].mxu0
    %1105 = vdwg.mxu0
    %v1106 = vmul.f32 %v1028, %v1103
    %v1107 = vadd.f32 %v950, %v1106
    %v1108 = vtanh.pop %v1107
    %v1109 = vsub.f32 %v946, %v1108
    %v1110 = vmul.f32 %v1035, %v1109
    %v1111 = vadd.f32 %v1108, %v1110
    %s1112 = scalar_lea.vmem [#allocation3], 144
    %v1113 = vld [vmem:[%s1112] sm:$0xff]
    %v1114 = vld [vmem:[%s1112 + $0x8] sm:$0xff]
    %v1115 = vld [vmem:[%s1112 + $0x10] sm:$0xff]
    %1116 = vmatprep.subr.mxu0 %v79
    %1117 = vmatpush1.msra.mxu0 %v78
    %1118 = vmatprep.subr.mxu0 %v81
    %1119 = vmatpush1.msra.mxu0 %v80
    %1120 = vmatprep.subr.mxu0 %v83
    %1121 = vmatpush1.msra.mxu0 %v82
    %1122 = vmatprep.subr.mxu0 %v85
    %1123 = vmatpush1.msra.mxu0 %v84
    %1124 = vmatprep.subr.mxu0 %v87
    %1125 = vmatpush1.msra.mxu0 %v86
    %1126 = vmatprep.subr.mxu0 %v89
    %1127 = vmatpush1.msra.mxu0 %v88
    %1128 = vmatprep.subr.mxu0 %v91
    %1129 = vmatpush1.msra.mxu0 %v90
    %1130 = vmatprep.subr.mxu0 %v93
    %1131 = vmatpush1.msra.mxu0 %v92
    %1132 = vmatprep.subr.mxu0 %v95
    %1133 = vmatpush1.msra.mxu0 %v94
    %1134 = vmatprep.subr.mxu0 %v97
    %1135 = vmatpush1.msra.mxu0 %v96
    %1136 = vmatprep.subr.mxu0 %v99
    %1137 = vmatpush1.msra.mxu0 %v98
    %1138 = vmatprep.subr.mxu0 %v101
    %1139 = vmatpush1.msra.mxu0 %v100
    %1140 = vmatprep.subr.mxu0 %v103
    %1141 = vmatpush1.msra.mxu0 %v102
    %1142 = vmatprep.subr.mxu0 %v105
    %1143 = vmatpush1.msra.mxu0 %v104
    %1144 = vmatprep.subr.mxu0 %v107
    %1145 = vmatpush1.msra.mxu0 %v106
    %1146 = vmatprep.subr.mxu0 %v109
    %1147 = vmatpush1.msra.mxu0 %v108
    %1148 = vmatprep.subr.mxu0 0.0
    %1149 = vmatpush1.msra.mxu0 0.0
    %1150 = vmatprep.subr.mxu0 0.0
    %1151 = vmatpush1.msra.mxu0 0.0
    %1152 = vmatprep.subr.mxu0 0.0
    %1153 = vmatpush1.msra.mxu0 0.0
    %1154 = vmatprep.subr.mxu0 0.0
    %1155 = vmatpush1.msra.mxu0 0.0
    %1156 = vmatprep.subr.mxu0 0.0
    %1157 = vmatpush1.msra.mxu0 0.0
    %1158 = vmatprep.subr.mxu0 0.0
    %1159 = vmatpush1.msra.mxu0 0.0
    %1160 = vmatprep.subr.mxu0 0.0
    %1161 = vmatpush1.msra.mxu0 0.0
    %1162 = vmatprep.subr.mxu0 0.0
    %1163 = vmatpush1.msra.mxu0 0.0
    %1164 = vmatprep.subr.mxu0 0.0
    %1165 = vmatpush1.msra.mxu0 0.0
    %1166 = vmatprep.subr.mxu0 0.0
    %1167 = vmatpush1.msra.mxu0 0.0
    %1168 = vmatprep.subr.mxu0 0.0
    %1169 = vmatpush1.msra.mxu0 0.0
    %1170 = vmatprep.subr.mxu0 0.0
    %1171 = vmatpush1.msra.mxu0 0.0
    %1172 = vmatprep.subr.mxu0 0.0
    %1173 = vmatpush1.msra.mxu0 0.0
    %1174 = vmatprep.subr.mxu0 0.0
    %1175 = vmatpush1.msra.mxu0 0.0
    %1176 = vmatprep.subr.mxu0 0.0
    %1177 = vmatpush1.msra.mxu0 0.0
    %1178 = vmatprep.subr.mxu0 0.0
    %1179 = vmatpush1.msra.mxu0 0.0
    %1180 = vmatprep.mubr.f32.mxu0 0.0
    %1181 = vmatmul.mubr.f32.gmra.mrb[0].mxu0 %v1111
    %v1182 = vpop.f32.mrb[0].mxu0
    %v1183 = vadd.f32 0.0, %v1182
    %v1184 = vpop.f32.mrb[0].mxu0
    %v1185 = vadd.f32 0.0, %v1184
    %1186 = vdwg.mxu0
    %v1187 = vadd.f32 %v1113, %v1183
    %v1188 = vxor.u32 %v1187, 2147483648
    %v1189 = vmul.f32 %v1188, 1.442695
    %v1190 = vpow.pop %v1189
    %v1191 = vadd.f32 %v1190, 1.0
    %v1192 = vrcp.pop %v1191
    %v1193 = vmul.f32 1.0, %v1192
    %v1194 = vadd.f32 %v1114, %v1185
    %v1195 = vxor.u32 %v1194, 2147483648
    %v1196 = vmul.f32 %v1195, 1.442695
    %v1197 = vpow.pop %v1196
    %v1198 = vadd.f32 %v1197, 1.0
    %v1199 = vrcp.pop %v1198
    %v1200 = vmul.f32 1.0, %v1199
    %1201 = vmatprep.subr.mxu0 0.0
    %1202 = vmatpush1.msra.mxu0 %v181
    %1203 = vmatprep.subr.mxu0 0.0
    %1204 = vmatpush1.msra.mxu0 %v182
    %1205 = vmatprep.subr.mxu0 0.0
    %1206 = vmatpush1.msra.mxu0 %v183
    %1207 = vmatprep.subr.mxu0 0.0
    %1208 = vmatpush1.msra.mxu0 %v184
    %1209 = vmatprep.subr.mxu0 0.0
    %1210 = vmatpush1.msra.mxu0 %v185
    %1211 = vmatprep.subr.mxu0 0.0
    %1212 = vmatpush1.msra.mxu0 %v186
    %1213 = vmatprep.subr.mxu0 0.0
    %1214 = vmatpush1.msra.mxu0 %v187
    %1215 = vmatprep.subr.mxu0 0.0
    %1216 = vmatpush1.msra.mxu0 %v188
    %1217 = vmatprep.subr.mxu0 0.0
    %1218 = vmatpush1.msra.mxu0 %v189
    %1219 = vmatprep.subr.mxu0 0.0
    %1220 = vmatpush1.msra.mxu0 %v190
    %1221 = vmatprep.subr.mxu0 0.0
    %1222 = vmatpush1.msra.mxu0 %v191
    %1223 = vmatprep.subr.mxu0 0.0
    %1224 = vmatpush1.msra.mxu0 %v192
    %1225 = vmatprep.subr.mxu0 0.0
    %1226 = vmatpush1.msra.mxu0 %v193
    %1227 = vmatprep.subr.mxu0 0.0
    %1228 = vmatpush1.msra.mxu0 %v194
    %1229 = vmatprep.subr.mxu0 0.0
    %1230 = vmatpush1.msra.mxu0 %v195
    %1231 = vmatprep.subr.mxu0 0.0
    %1232 = vmatpush1.msra.mxu0 %v196
    %1233 = vmatprep.subr.mxu0 0.0
    %1234 = vmatpush1.msra.mxu0 0.0
    %1235 = vmatprep.subr.mxu0 0.0
    %1236 = vmatpush1.msra.mxu0 0.0
    %1237 = vmatprep.subr.mxu0 0.0
    %1238 = vmatpush1.msra.mxu0 0.0
    %1239 = vmatprep.subr.mxu0 0.0
    %1240 = vmatpush1.msra.mxu0 0.0
    %1241 = vmatprep.subr.mxu0 0.0
    %1242 = vmatpush1.msra.mxu0 0.0
    %1243 = vmatprep.subr.mxu0 0.0
    %1244 = vmatpush1.msra.mxu0 0.0
    %1245 = vmatprep.subr.mxu0 0.0
    %1246 = vmatpush1.msra.mxu0 0.0
    %1247 = vmatprep.subr.mxu0 0.0
    %1248 = vmatpush1.msra.mxu0 0.0
    %1249 = vmatprep.subr.mxu0 0.0
    %1250 = vmatpush1.msra.mxu0 0.0
    %1251 = vmatprep.subr.mxu0 0.0
    %1252 = vmatpush1.msra.mxu0 0.0
    %1253 = vmatprep.subr.mxu0 0.0
    %1254 = vmatpush1.msra.mxu0 0.0
    %1255 = vmatprep.subr.mxu0 0.0
    %1256 = vmatpush1.msra.mxu0 0.0
    %1257 = vmatprep.subr.mxu0 0.0
    %1258 = vmatpush1.msra.mxu0 0.0
    %1259 = vmatprep.subr.mxu0 0.0
    %1260 = vmatpush1.msra.mxu0 0.0
    %1261 = vmatprep.subr.mxu0 0.0
    %1262 = vmatpush1.msra.mxu0 0.0
    %1263 = vmatprep.subr.mxu0 0.0
    %1264 = vmatpush1.msra.mxu0 0.0
    %1265 = vmatprep.mubr.f32.mxu0 0.0
    %1266 = vmatmul.mubr.f32.gmra.mrb[0].mxu0 %v1111
    %v1267 = vpop.f32.mrb[0].mxu0
    %v1268 = vadd.f32 %v72, %v1267
    %v1269 = vpop.f32.mrb[0].mxu0
    %1270 = vdwg.mxu0
    %v1271 = vmul.f32 %v1193, %v1268
    %v1272 = vadd.f32 %v1115, %v1271
    %v1273 = vtanh.pop %v1272
    %v1274 = vsub.f32 %v1111, %v1273
    %v1275 = vmul.f32 %v1200, %v1274
    %v1276 = vadd.f32 %v1273, %v1275
    %s1277 = scalar_lea.vmem [#allocation3], 168
    %v1278 = vld [vmem:[%s1277] sm:$0xff]
    %v1279 = vld [vmem:[%s1277 + $0x8] sm:$0xff]
    %v1280 = vld [vmem:[%s1277 + $0x10] sm:$0xff]
    %1281 = vmatprep.subr.mxu0 %v79
    %1282 = vmatpush1.msra.mxu0 %v78
    %1283 = vmatprep.subr.mxu0 %v81
    %1284 = vmatpush1.msra.mxu0 %v80
    %1285 = vmatprep.subr.mxu0 %v83
    %1286 = vmatpush1.msra.mxu0 %v82
    %1287 = vmatprep.subr.mxu0 %v85
    %1288 = vmatpush1.msra.mxu0 %v84
    %1289 = vmatprep.subr.mxu0 %v87
    %1290 = vmatpush1.msra.mxu0 %v86
    %1291 = vmatprep.subr.mxu0 %v89
    %1292 = vmatpush1.msra.mxu0 %v88
    %1293 = vmatprep.subr.mxu0 %v91
    %1294 = vmatpush1.msra.mxu0 %v90
    %1295 = vmatprep.subr.mxu0 %v93
    %1296 = vmatpush1.msra.mxu0 %v92
    %1297 = vmatprep.subr.mxu0 %v95
    %1298 = vmatpush1.msra.mxu0 %v94
    %1299 = vmatprep.subr.mxu0 %v97
    %1300 = vmatpush1.msra.mxu0 %v96
    %1301 = vmatprep.subr.mxu0 %v99
    %1302 = vmatpush1.msra.mxu0 %v98
    %1303 = vmatprep.subr.mxu0 %v101
    %1304 = vmatpush1.msra.mxu0 %v100
    %1305 = vmatprep.subr.mxu0 %v103
    %1306 = vmatpush1.msra.mxu0 %v102
    %1307 = vmatprep.subr.mxu0 %v105
    %1308 = vmatpush1.msra.mxu0 %v104
    %1309 = vmatprep.subr.mxu0 %v107
    %1310 = vmatpush1.msra.mxu0 %v106
    %1311 = vmatprep.subr.mxu0 %v109
    %1312 = vmatpush1.msra.mxu0 %v108
    %1313 = vmatprep.subr.mxu0 0.0
    %1314 = vmatpush1.msra.mxu0 0.0
    %1315 = vmatprep.subr.mxu0 0.0
    %1316 = vmatpush1.msra.mxu0 0.0
    %1317 = vmatprep.subr.mxu0 0.0
    %1318 = vmatpush1.msra.mxu0 0.0
    %1319 = vmatprep.subr.mxu0 0.0
    %1320 = vmatpush1.msra.mxu0 0.0
    %1321 = vmatprep.subr.mxu0 0.0
    %1322 = vmatpush1.msra.mxu0 0.0
    %1323 = vmatprep.subr.mxu0 0.0
    %1324 = vmatpush1.msra.mxu0 0.0
    %1325 = vmatprep.subr.mxu0 0.0
    %1326 = vmatpush1.msra.mxu0 0.0
    %1327 = vmatprep.subr.mxu0 0.0
    %1328 = vmatpush1.msra.mxu0 0.0
    %1329 = vmatprep.subr.mxu0 0.0
    %1330 = vmatpush1.msra.mxu0 0.0
    %1331 = vmatprep.subr.mxu0 0.0
    %1332 = vmatpush1.msra.mxu0 0.0
    %1333 = vmatprep.subr.mxu0 0.0
    %1334 = vmatpush1.msra.mxu0 0.0
    %1335 = vmatprep.subr.mxu0 0.0
    %1336 = vmatpush1.msra.mxu0 0.0
    %1337 = vmatprep.subr.mxu0 0.0
    %1338 = vmatpush1.msra.mxu0 0.0
    %1339 = vmatprep.subr.mxu0 0.0
    %1340 = vmatpush1.msra.mxu0 0.0
    %1341 = vmatprep.subr.mxu0 0.0
    %1342 = vmatpush1.msra.mxu0 0.0
    %1343 = vmatprep.subr.mxu0 0.0
    %1344 = vmatpush1.msra.mxu0 0.0
    %1345 = vmatprep.mubr.f32.mxu0 0.0
    %1346 = vmatmul.mubr.f32.gmra.mrb[0].mxu0 %v1276
    %v1347 = vpop.f32.mrb[0].mxu0
    %v1348 = vadd.f32 0.0, %v1347
    %v1349 = vpop.f32.mrb[0].mxu0
    %v1350 = vadd.f32 0.0, %v1349
    %1351 = vdwg.mxu0
    %v1352 = vadd.f32 %v1278, %v1348
    %v1353 = vxor.u32 %v1352, 2147483648
    %v1354 = vmul.f32 %v1353, 1.442695
    %v1355 = vpow.pop %v1354
    %v1356 = vadd.f32 %v1355, 1.0
    %v1357 = vrcp.pop %v1356
    %v1358 = vmul.f32 1.0, %v1357
    %v1359 = vadd.f32 %v1279, %v1350
    %v1360 = vxor.u32 %v1359, 2147483648
    %v1361 = vmul.f32 %v1360, 1.442695
    %v1362 = vpow.pop %v1361
    %v1363 = vadd.f32 %v1362, 1.0
    %v1364 = vrcp.pop %v1363
    %v1365 = vmul.f32 1.0, %v1364
    %1366 = vmatprep.subr.mxu0 0.0
    %1367 = vmatpush1.msra.mxu0 %v181
    %1368 = vmatprep.subr.mxu0 0.0
    %1369 = vmatpush1.msra.mxu0 %v182
    %1370 = vmatprep.subr.mxu0 0.0
    %1371 = vmatpush1.msra.mxu0 %v183
    %1372 = vmatprep.subr.mxu0 0.0
    %1373 = vmatpush1.msra.mxu0 %v184
    %1374 = vmatprep.subr.mxu0 0.0
    %1375 = vmatpush1.msra.mxu0 %v185
    %1376 = vmatprep.subr.mxu0 0.0
    %1377 = vmatpush1.msra.mxu0 %v186
    %1378 = vmatprep.subr.mxu0 0.0
    %1379 = vmatpush1.msra.mxu0 %v187
    %1380 = vmatprep.subr.mxu0 0.0
    %1381 = vmatpush1.msra.mxu0 %v188
    %1382 = vmatprep.subr.mxu0 0.0
    %1383 = vmatpush1.msra.mxu0 %v189
    %1384 = vmatprep.subr.mxu0 0.0
    %1385 = vmatpush1.msra.mxu0 %v190
    %1386 = vmatprep.subr.mxu0 0.0
    %1387 = vmatpush1.msra.mxu0 %v191
    %1388 = vmatprep.subr.mxu0 0.0
    %1389 = vmatpush1.msra.mxu0 %v192
    %1390 = vmatprep.subr.mxu0 0.0
    %1391 = vmatpush1.msra.mxu0 %v193
    %1392 = vmatprep.subr.mxu0 0.0
    %1393 = vmatpush1.msra.mxu0 %v194
    %1394 = vmatprep.subr.mxu0 0.0
    %1395 = vmatpush1.msra.mxu0 %v195
    %1396 = vmatprep.subr.mxu0 0.0
    %1397 = vmatpush1.msra.mxu0 %v196
    %1398 = vmatprep.subr.mxu0 0.0
    %1399 = vmatpush1.msra.mxu0 0.0
    %1400 = vmatprep.subr.mxu0 0.0
    %1401 = vmatpush1.msra.mxu0 0.0
    %1402 = vmatprep.subr.mxu0 0.0
    %1403 = vmatpush1.msra.mxu0 0.0
    %1404 = vmatprep.subr.mxu0 0.0
    %1405 = vmatpush1.msra.mxu0 0.0
    %1406 = vmatprep.subr.mxu0 0.0
    %1407 = vmatpush1.msra.mxu0 0.0
    %1408 = vmatprep.subr.mxu0 0.0
    %1409 = vmatpush1.msra.mxu0 0.0
    %1410 = vmatprep.subr.mxu0 0.0
    %1411 = vmatpush1.msra.mxu0 0.0
    %1412 = vmatprep.subr.mxu0 0.0
    %1413 = vmatpush1.msra.mxu0 0.0
    %1414 = vmatprep.subr.mxu0 0.0
    %1415 = vmatpush1.msra.mxu0 0.0
    %1416 = vmatprep.subr.mxu0 0.0
    %1417 = vmatpush1.msra.mxu0 0.0
    %1418 = vmatprep.subr.mxu0 0.0
    %1419 = vmatpush1.msra.mxu0 0.0
    %1420 = vmatprep.subr.mxu0 0.0
    %1421 = vmatpush1.msra.mxu0 0.0
    %1422 = vmatprep.subr.mxu0 0.0
    %1423 = vmatpush1.msra.mxu0 0.0
    %1424 = vmatprep.subr.mxu0 0.0
    %1425 = vmatpush1.msra.mxu0 0.0
    %1426 = vmatprep.subr.mxu0 0.0
    %1427 = vmatpush1.msra.mxu0 0.0
    %1428 = vmatprep.subr.mxu0 0.0
    %1429 = vmatpush1.msra.mxu0 0.0
    %1430 = vmatprep.mubr.f32.mxu0 0.0
    %1431 = vmatmul.mubr.f32.gmra.mrb[0].mxu0 %v1276
    %v1432 = vpop.f32.mrb[0].mxu0
    %v1433 = vadd.f32 %v72, %v1432
    %v1434 = vpop.f32.mrb[0].mxu0
    %1435 = vdwg.mxu0
    %v1436 = vmul.f32 %v1358, %v1433
    %v1437 = vadd.f32 %v1280, %v1436
    %v1438 = vtanh.pop %v1437
    %v1439 = vsub.f32 %v1276, %v1438
    %v1440 = vmul.f32 %v1365, %v1439
    %v1441 = vadd.f32 %v1438, %v1440
    %1442 = vst [vmem:[#allocation2] sm:$0xff] %v1441
    // Predicated region
    $region38: #{tpu_custom_call.1} parent=1 // pred_check
      %p1443 = pneg %p62
    $region39: #{tpu_custom_call.1} parent=1 // pred_check_branch
      %1445 = sbr.rel (%p1443) target = $region41
    $region40: #{tpu_custom_call.1} parent=1 // pred_region
      %v1446 = vld [vmem:[#allocation8] sm:$0xff]
      %v1447 = vld [vmem:[#allocation8 + $0x8] sm:$0xff]
      %v1448 = vld [vmem:[#allocation8 + $0x10] sm:$0xff]
      %v1449 = vld [vmem:[#allocation8 + $0x18] sm:$0xff]
      %v1450 = vld [vmem:[#allocation8 + $0x20] sm:$0xff]
      %v1451 = vld [vmem:[#allocation8 + $0x28] sm:$0xff]
      %v1452 = vld [vmem:[#allocation8 + $0x30] sm:$0xff]
      %v1453 = vld [vmem:[#allocation8 + $0x38] sm:$0xff]
      %v1454 = vld [vmem:[#allocation8 + $0x40] sm:$0xff]
      %v1455 = vld [vmem:[#allocation8 + $0x48] sm:$0xff]
      %v1456 = vld [vmem:[#allocation8 + $0x50] sm:$0xff]
      %v1457 = vld [vmem:[#allocation8 + $0x58] sm:$0xff]
      %v1458 = vld [vmem:[#allocation8 + $0x60] sm:$0xff]
      %v1459 = vld [vmem:[#allocation8 + $0x68] sm:$0xff]
      %v1460 = vld [vmem:[#allocation8 + $0x70] sm:$0xff]
      %v1461 = vld [vmem:[#allocation8 + $0x78] sm:$0xff]
      %v1462 = vld [vmem:[%s4] sm:$0x1]
      %v1464 = vlaneseq
      %v1465 = vshrl.u32 %v1464, 7
      %v1466 = vsub.s32 0, %v1465
      %v1467 = vrot.slane %v1462, %v1466
      %1469 = vmatprep.subr.mxu0 0.0
      %1470 = vmatpush1.msra.mxu0 %v1446
      %1471 = vmatprep.subr.mxu0 0.0
      %1472 = vmatpush1.msra.mxu0 %v1447
      %1473 = vmatprep.subr.mxu0 0.0
      %1474 = vmatpush1.msra.mxu0 %v1448
      %1475 = vmatprep.subr.mxu0 0.0
      %1476 = vmatpush1.msra.mxu0 %v1449
      %1477 = vmatprep.subr.mxu0 0.0
      %1478 = vmatpush1.msra.mxu0 %v1450
      %1479 = vmatprep.subr.mxu0 0.0
      %1480 = vmatpush1.msra.mxu0 %v1451
      %1481 = vmatprep.subr.mxu0 0.0
      %1482 = vmatpush1.msra.mxu0 %v1452
      %1483 = vmatprep.subr.mxu0 0.0
      %1484 = vmatpush1.msra.mxu0 %v1453
      %1485 = vmatprep.subr.mxu0 0.0
      %1486 = vmatpush1.msra.mxu0 %v1454
      %1487 = vmatprep.subr.mxu0 0.0
      %1488 = vmatpush1.msra.mxu0 %v1455
      %1489 = vmatprep.subr.mxu0 0.0
      %1490 = vmatpush1.msra.mxu0 %v1456
      %1491 = vmatprep.subr.mxu0 0.0
      %1492 = vmatpush1.msra.mxu0 %v1457
      %1493 = vmatprep.subr.mxu0 0.0
      %1494 = vmatpush1.msra.mxu0 %v1458
      %1495 = vmatprep.subr.mxu0 0.0
      %1496 = vmatpush1.msra.mxu0 %v1459
      %1497 = vmatprep.subr.mxu0 0.0
      %1498 = vmatpush1.msra.mxu0 %v1460
      %1499 = vmatprep.subr.mxu0 0.0
      %1500 = vmatpush1.msra.mxu0 %v1461
      %1501 = vmatprep.subr.mxu0 0.0
      %1502 = vmatpush1.msra.mxu0 0.0
      %1503 = vmatprep.subr.mxu0 0.0
      %1504 = vmatpush1.msra.mxu0 0.0
      %1505 = vmatprep.subr.mxu0 0.0
      %1506 = vmatpush1.msra.mxu0 0.0
      %1507 = vmatprep.subr.mxu0 0.0
      %1508 = vmatpush1.msra.mxu0 0.0
      %1509 = vmatprep.subr.mxu0 0.0
      %1510 = vmatpush1.msra.mxu0 0.0
      %1511 = vmatprep.subr.mxu0 0.0
      %1512 = vmatpush1.msra.mxu0 0.0
      %1513 = vmatprep.subr.mxu0 0.0
      %1514 = vmatpush1.msra.mxu0 0.0
      %1515 = vmatprep.subr.mxu0 0.0
      %1516 = vmatpush1.msra.mxu0 0.0
      %1517 = vmatprep.subr.mxu0 0.0
      %1518 = vmatpush1.msra.mxu0 0.0
      %1519 = vmatprep.subr.mxu0 0.0
      %1520 = vmatpush1.msra.mxu0 0.0
      %1521 = vmatprep.subr.mxu0 0.0
      %1522 = vmatpush1.msra.mxu0 0.0
      %1523 = vmatprep.subr.mxu0 0.0
      %1524 = vmatpush1.msra.mxu0 0.0
      %1525 = vmatprep.subr.mxu0 0.0
      %1526 = vmatpush1.msra.mxu0 0.0
      %1527 = vmatprep.subr.mxu0 0.0
      %1528 = vmatpush1.msra.mxu0 0.0
      %1529 = vmatprep.subr.mxu0 0.0
      %1530 = vmatpush1.msra.mxu0 0.0
      %1531 = vmatprep.subr.mxu0 0.0
      %1532 = vmatpush1.msra.mxu0 0.0
      %1533 = vmatprep.mubr.f32.mxu0 0.0
      %1534 = vmatmul.mubr.f32.gmra.mrb[0].mxu0 %v1441
      %v1535 = vpop.f32.mrb[0].mxu0
      %v1536 = vadd.f32 %v1467, %v1535
      %v1537 = vpop.f32.mrb[0].mxu0
      %1538 = vdwg.mxu0
      %1539 = vst [vmem:[#allocation9] sm:$0xff] %v1536
    $region41: #{tpu_custom_call.1} parent=1 // pred_fallthru
      _
    // Predicated region
    $region42: #{tpu_custom_call.1} parent=1 // pred_check
      _
    $region43: #{tpu_custom_call.1} parent=1 // pred_check_branch
      %1541 = sbr.rel (0) target = $region45
    $region44: #{tpu_custom_call.1} parent=1 // pred_region
      %s1543 = ssub.s32 128, 128
      %1544 = vsyncadd [#allocation5], %s1543
      %s1546 = sshll.u32 [#allocation9], 4
      %s1547 = int_to_ptr.vmem [resolvable:$true] %s1546
      %1549 = dma.vmem_to_hbm [thread:$0]  %s1547, 128, %s5, [#allocation5]
    $region45: #{tpu_custom_call.1} parent=1 // pred_fallthru
      _
    // Predicated region
    $region46: #{tpu_custom_call.1} parent=1 // pred_check
      _
    $region47: #{tpu_custom_call.1} parent=1 // pred_check_branch
      %1551 = sbr.rel (0) target = $region49
    $region48: #{tpu_custom_call.1} parent=1 // pred_region
      %1552 = dma.done [#allocation5], 128
    $region49: #{tpu_custom_call.1} parent=1 // pred_fallthru
      _
    %1553 = vsyncpa [#allocation4], 1
    %1554 = vsyncpa [#allocation7], 1
    %1555 = vsyncpa [#allocation5], 1

</llo_original>
